<compile_context>
chip_gen: v7x
topology: tpu7x:2x2x1
jax: 0.10.0
libtpu: 0.0.40
codegen_flags: <defaults>
</compile_context>

<pallas_src>
import functools

import jax
import jax.numpy as jnp
from jax.experimental import pallas as pl
from jax.experimental.pallas import tpu as pltpu


CONFIG = dict(vocab=100, hidden=32, layers=2, heads=4,
              intermediate=128, max_pos=64, type_vocab=2)

VEC_PACK = 128   # lane width of the packed vector slabs / padded logits output


# -----------------------------------------------------------------------------
# Fused kernel: grid = (batch, layer).  One batch's activations live in VMEM
# scratch across the (sequential) layer axis.
# -----------------------------------------------------------------------------
def fused_bert_kernel(
    # inputs
    emb_ref,      # (S, H)       this batch's summed embeddings
    neg_ref,      # (1, 1, S)    additive key mask (0 valid / -1e9 padded)
    wqkv_ref,     # (1, H, 3H)   bf16, layer l
    wo_ref,       # (1, H, H)    bf16, layer l
    wi_ref,       # (1, H, I)    bf16, layer l
    wf_ref,       # (1, I, H)    bf16, layer l
    lvec_ref,     # (1, 8, 128)  packed per-layer vectors (f32)
    pool_w_ref,   # (H, H)
    cls_w_ref,    # (H, 128)     zero-padded classifier weight
    tail_ref,     # (8, 128)     packed replicated vectors
    # output
    logits_ref,   # (1, 8, 128)  lane-dense padded logits block for this batch
    # VMEM scratch
    h_vmem,       # (S, H) f32   resident activations
    ctx_vmem,     # (S, H) f32   assembled attention context
    *, S, H, I, nh, dh, scale, eps):

    def layernorm(x, g, b):
        mu = jnp.mean(x, axis=-1, keepdims=True)
        var = jnp.mean((x - mu) * (x - mu), axis=-1, keepdims=True)
        return (x - mu) * jax.lax.rsqrt(var + eps) * g + b

    l = pl.program_id(1)
    tail = tail_ref[...]                  # (8, 128)

    # ---- embeddings LayerNorm (first layer step of each batch, no residual) ----
    @pl.when(l == 0)
    def _():
        h_vmem[...] = layernorm(emb_ref[...], tail[0:1, 0:H], tail[1:2, 0:H])

    h = h_vmem[...]                       # (S, H) f32, VMEM resident
    lv = lvec_ref[0]                      # (8, 128) this layer's packed vectors
    neg = neg_ref[0]                      # (1, S) additive key mask

    # ---- self-attention: fused QKV projection (bf16 weights, f32 accumulation) ----
    qkv = jnp.dot(h.astype(jnp.bfloat16), wqkv_ref[0],
                  preferred_element_type=jnp.float32) + lv[0:1, 0:3 * H]

    # per-head attention, per-batch scores (no cross-batch waste, no big mask)
    for hd in range(nh):                  # static unroll over heads
        lo, hi = hd * dh, (hd + 1) * dh
        q = qkv[:, lo:hi] * scale                                  # scale on q (S*dh)
        k = qkv[:, H + lo:H + hi]
        v = qkv[:, 2 * H + lo:2 * H + hi]
        s = jnp.einsum("qd,kd->qk", q, k,
                       preferred_element_type=jnp.float32)          # (S, S)
        s = s + neg
        m = jnp.max(s, axis=-1, keepdims=True)
        p = jnp.exp(s - m)
        p = p * pl.reciprocal(jnp.sum(p, axis=-1, keepdims=True), approx=True)
        ctx_vmem[:, lo:hi] = jnp.dot(p, v, preferred_element_type=jnp.float32)

    # single output projection over the assembled (S, H) context
    attn = jnp.dot(ctx_vmem[...].astype(jnp.bfloat16), wo_ref[0],
                   preferred_element_type=jnp.float32) + lv[1:2, 0:H]
    # dropout(0.1) eval -> identity
    h1 = layernorm(attn + h, lv[2:3, 0:H], lv[3:4, 0:H])

    # ---- feed-forward ----
    inter = jnp.dot(h1.astype(jnp.bfloat16), wi_ref[0],
                    preferred_element_type=jnp.float32) + lv[4:5, 0:I]
    # TODO(synk): HF BERT uses exact erf-based GELU; tanh approximation used here
    # for robust Mosaic lowering (difference ~1e-3).
    inter = 0.5 * inter * (1.0 + jnp.tanh(
        0.7978845608028654 * (inter + 0.044715 * inter * inter * inter)))
    ffn = jnp.dot(inter.astype(jnp.bfloat16), wf_ref[0],
                  preferred_element_type=jnp.float32) + lv[5:6, 0:H]
    h2 = layernorm(ffn + h1, lv[6:7, 0:H], lv[7:8, 0:H])
    h_vmem[...] = h2

    # ---- pooler ([CLS] = row 0 of this batch block) + classifier, last layer ----
    @pl.when(l == pl.num_programs(1) - 1)
    def _():
        cls_tok = h2[0:1, :]                                        # (1, H)
        pooled = jnp.tanh(
            jnp.dot(cls_tok, pool_w_ref[...], preferred_element_type=jnp.float32)
            + tail[2:3, 0:H])
        # dropout(0.1) eval -> identity
        row = (jnp.dot(pooled, cls_w_ref[...], preferred_element_type=jnp.float32)
               + tail[3:4, :])                                      # (1, 128), cols 2.. are 0
        logits_ref[0] = jnp.broadcast_to(row, (8, VEC_PACK)).astype(logits_ref.dtype)


# -----------------------------------------------------------------------------
# Parameters (per-layer weights stacked on a leading layer axis, QKV fused)
# -----------------------------------------------------------------------------
def init_params(key, cfg):
    H, I, L = cfg["hidden"], cfg["intermediate"], cfg["layers"]
    std = 0.02

    def nrm(k, shape):
        return std * jax.random.normal(k, shape, jnp.float32)

    keys = iter(jax.random.split(key, 16))
    return {
        "word_emb": nrm(next(keys), (cfg["vocab"], H)),
        "pos_emb": nrm(next(keys), (cfg["max_pos"], H)),
        "type_emb": nrm(next(keys), (cfg["type_vocab"], H)),
        "emb_ln_g": jnp.ones((H,), jnp.float32),
        "emb_ln_b": jnp.zeros((H,), jnp.float32),
        "pool_w": nrm(next(keys), (H, H)),
        "pool_b": jnp.zeros((H,), jnp.float32),
        "cls_w": nrm(next(keys), (H, 2)),
        "cls_b": jnp.zeros((2,), jnp.float32),
        "stacked": {
            "wqkv": nrm(next(keys), (L, H, 3 * H)),
            "bqkv": jnp.zeros((L, 3 * H), jnp.float32),
            "wo": nrm(next(keys), (L, H, H)),
            "bo": jnp.zeros((L, H), jnp.float32),
            "ln1_g": jnp.ones((L, H), jnp.float32),
            "ln1_b": jnp.zeros((L, H), jnp.float32),
            "wi": nrm(next(keys), (L, H, I)),
            "bi": jnp.zeros((L, I), jnp.float32),
            "wf": nrm(next(keys), (L, I, H)),
            "bf": jnp.zeros((L, H), jnp.float32),
            "ln2_g": jnp.ones((L, H), jnp.float32),
            "ln2_b": jnp.zeros((L, H), jnp.float32),
        },
    }


# -----------------------------------------------------------------------------
# Forward: embedding gathers + tiny packing in JAX, everything else in one kernel
# -----------------------------------------------------------------------------
def bert_qp_forward(params, input_ids, attention_mask, token_type_ids, cfg=CONFIG):
    B, S = input_ids.shape
    H, nh = cfg["hidden"], cfg["heads"]
    I = cfg["intermediate"]
    dh = H // nh
    L = cfg["layers"]

    # ---- embeddings (gathers are glue JAX; LayerNorm done in-kernel) ----
    positions = jnp.arange(S, dtype=jnp.int32)
    emb = (params["word_emb"][input_ids]
           + params["pos_emb"][positions][None, :, :]
           + params["type_emb"][token_type_ids]).astype(jnp.float32).reshape(B * S, H)

    # ---- tiny per-batch additive key mask: 0 if valid, -1e9 if padded ----
    neg_mask = ((1.0 - attention_mask.astype(jnp.float32)) * -1e9).reshape(B, 1, S)

    stk = params["stacked"]
    # bf16 matmul weights (halves weight DMA; f32 accumulation in-kernel)
    wqkv = stk["wqkv"].astype(jnp.bfloat16)
    wo = stk["wo"].astype(jnp.bfloat16)
    wi = stk["wi"].astype(jnp.bfloat16)
    wf = stk["wf"].astype(jnp.bfloat16)

    # ---- pack the 8 tiny per-layer vectors into one (L, 8, 128) slab ----
    lvec = jnp.zeros((L, 8, VEC_PACK), jnp.float32)
    lvec = lvec.at[:, 0, 0:3 * H].set(stk["bqkv"])
    lvec = lvec.at[:, 1, 0:H].set(stk["bo"])
    lvec = lvec.at[:, 2, 0:H].set(stk["ln1_g"])
    lvec = lvec.at[:, 3, 0:H].set(stk["ln1_b"])
    lvec = lvec.at[:, 4, 0:I].set(stk["bi"])
    lvec = lvec.at[:, 5, 0:H].set(stk["bf"])
    lvec = lvec.at[:, 6, 0:H].set(stk["ln2_g"])
    lvec = lvec.at[:, 7, 0:H].set(stk["ln2_b"])

    # ---- pack replicated small vectors into one (8, 128) slab ----
    tail = jnp.zeros((8, VEC_PACK), jnp.float32)
    tail = tail.at[0, 0:H].set(params["emb_ln_g"])
    tail = tail.at[1, 0:H].set(params["emb_ln_b"])
    tail = tail.at[2, 0:H].set(params["pool_b"])
    tail = tail.at[3, 0:2].set(params["cls_b"])

    # ---- zero-pad classifier weight for a lane-dense (.,128) output ----
    cls_w = jnp.zeros((H, VEC_PACK), jnp.float32).at[:, 0:2].set(params["cls_w"])

    kernel = functools.partial(
        fused_bert_kernel, S=S, H=H, I=I, nh=nh, dh=dh,
        scale=float(dh) ** -0.5,             # Python float -> no captured tracer
        eps=1e-12)

    in_specs = [
        pl.BlockSpec((S, H), lambda b, l: (b, 0)),            # emb (batch b's rows)
        pl.BlockSpec((1, 1, S), lambda b, l: (b, 0, 0)),      # neg_mask
        pl.BlockSpec((1, H, 3 * H), lambda b, l: (l, 0, 0)),  # wqkv
        pl.BlockSpec((1, H, H), lambda b, l: (l, 0, 0)),      # wo
        pl.BlockSpec((1, H, I), lambda b, l: (l, 0, 0)),      # wi
        pl.BlockSpec((1, I, H), lambda b, l: (l, 0, 0)),      # wf
        pl.BlockSpec((1, 8, VEC_PACK), lambda b, l: (l, 0, 0)),   # packed layer vecs
        pl.BlockSpec((H, H), lambda b, l: (0, 0)),            # pool_w
        pl.BlockSpec((H, VEC_PACK), lambda b, l: (0, 0)),     # padded cls_w
        pl.BlockSpec((8, VEC_PACK), lambda b, l: (0, 0)),     # packed tail vecs
    ]

    out = pl.pallas_call(
        kernel,
        out_shape=jax.ShapeDtypeStruct((B, 8, VEC_PACK), jnp.float32),
        grid=(B, L),
        in_specs=in_specs,
        out_specs=pl.BlockSpec((1, 8, VEC_PACK), lambda b, l: (b, 0, 0)),
        scratch_shapes=[pltpu.VMEM((S, H), jnp.float32),      # resident activations
                        pltpu.VMEM((S, H), jnp.float32)],     # assembled attn context
        compiler_params=pltpu.CompilerParams(
            dimension_semantics=("parallel", "arbitrary"),    # batch parallel, layers sequential
            vmem_limit_bytes=32 * 1024 * 1024),
    )(emb, neg_mask, wqkv, wo, wi, wf, lvec, pool_w := params["pool_w"], cls_w, tail)

    return out[:, 0, :2]                                      # un-pad the logits


# -----------------------------------------------------------------------------
if __name__ == "__main__":
    root = jax.random.PRNGKey(0)
    k_params, k_ids = jax.random.split(root)

    B, S = 2, 8
    params = init_params(k_params, CONFIG)

    input_ids = jax.random.randint(k_ids, (B, S), 0, CONFIG["vocab"], dtype=jnp.int32)
    token_type_ids = jnp.concatenate(
        [jnp.zeros((B, S // 2), jnp.int32), jnp.ones((B, S // 2), jnp.int32)], axis=1)
    attention_mask = jnp.ones((B, S), jnp.int32).at[1, S - 2:].set(0)  # some padding

    fwd = jax.jit(bert_qp_forward)
    logits = jax.block_until_ready(fwd(params, input_ids, attention_mask,
                                       token_type_ids))
    assert logits.shape == (B, 2) and logits.dtype == jnp.float32
    assert bool(jnp.all(jnp.isfinite(logits)))
    print("KERNEL_OK")
</pallas_src>

<mosaic_0001>
module attributes {stable_mosaic.version = 11 : i64} {
  func.func @fused_bert_kernel(%arg0: i32, %arg1: i32, %arg2: memref<8x32xf32, #tpu.memory_space<vmem>>, %arg3: memref<1x1x8xf32, #tpu.memory_space<vmem>>, %arg4: memref<1x32x96xbf16, #tpu.memory_space<vmem>>, %arg5: memref<1x32x32xbf16, #tpu.memory_space<vmem>>, %arg6: memref<1x32x128xbf16, #tpu.memory_space<vmem>>, %arg7: memref<1x128x32xbf16, #tpu.memory_space<vmem>>, %arg8: memref<1x8x128xf32, #tpu.memory_space<vmem>>, %arg9: memref<32x32xf32, #tpu.memory_space<vmem>>, %arg10: memref<32x128xf32, #tpu.memory_space<vmem>>, %arg11: memref<8x128xf32, #tpu.memory_space<vmem>>, %arg12: memref<1x8x128xf32, #tpu.memory_space<vmem>>, %arg13: memref<8x32xf32, #tpu.memory_space<vmem>>, %arg14: memref<8x32xf32, #tpu.memory_space<vmem>>) attributes {dimension_semantics = [#tpu.dimension_semantics<parallel>, #tpu.dimension_semantics<arbitrary>], iteration_bounds = array<i64: 2, 2>, scalar_prefetch = 0 : i64, scratch_operands = 2 : i64, tpu.core_type = #tpu.core_type<tc>, window_params = [{transform_indices = @transform_0, window_bounds = array<i64: 8, 32>}, {transform_indices = @transform_1, window_bounds = array<i64: 1, 1, 8>}, {transform_indices = @transform_2, window_bounds = array<i64: 1, 32, 96>}, {transform_indices = @transform_3, window_bounds = array<i64: 1, 32, 32>}, {transform_indices = @transform_4, window_bounds = array<i64: 1, 32, 128>}, {transform_indices = @transform_5, window_bounds = array<i64: 1, 128, 32>}, {transform_indices = @transform_6, window_bounds = array<i64: 1, 8, 128>}, {pipeline_mode = #tpu.pipeline_mode<synchronous>, transform_indices = @transform_7, window_bounds = array<i64: 32, 32>}, {pipeline_mode = #tpu.pipeline_mode<synchronous>, transform_indices = @transform_8, window_bounds = array<i64: 32, 128>}, {pipeline_mode = #tpu.pipeline_mode<synchronous>, transform_indices = @transform_9, window_bounds = array<i64: 8, 128>}, {transform_indices = @transform_10, window_bounds = array<i64: 1, 8, 128>}]} {
    %c0 = arith.constant 0 : index
    %c0_0 = arith.constant 0 : index
    %0 = vector.load %arg11[%c0, %c0_0] : memref<8x128xf32, #tpu.memory_space<vmem>>, vector<8x128xf32>
    %c0_i32 = arith.constant 0 : i32
    %1 = arith.cmpi eq, %arg1, %c0_i32 : i32
    %2 = arith.extui %1 : i1 to i32
    %c0_i32_1 = arith.constant 0 : i32
    %3 = arith.cmpi ne, %2, %c0_i32_1 : i32
    scf.if %3 {
      %c0_69 = arith.constant 0 : index
      %c0_70 = arith.constant 0 : index
      %189 = vector.load %arg2[%c0_69, %c0_70] : memref<8x32xf32, #tpu.memory_space<vmem>>, vector<8x32xf32>
      %190 = vector.extract_strided_slice %0 {offsets = [0, 0], sizes = [1, 32], strides = [1, 1]} : vector<8x128xf32> to vector<1x32xf32>
      %191 = vector.extract_strided_slice %0 {offsets = [1, 0], sizes = [1, 32], strides = [1, 1]} : vector<8x128xf32> to vector<1x32xf32>
      %cst_71 = arith.constant dense<0.000000e+00> : vector<8xf32>
      %192 = vector.multi_reduction <add>, %189, %cst_71 [1] : vector<8x32xf32> to vector<8xf32>
      %193 = vector.shape_cast %192 : vector<8xf32> to vector<8x1xf32>
      %cst_72 = arith.constant 3.200000e+01 : f32
      %194 = vector.broadcast %cst_72 : f32 to vector<8x1xf32>
      %195 = arith.divf %193, %194 : vector<8x1xf32>
      %196 = vector.broadcast %195 : vector<8x1xf32> to vector<8x32xf32>
      %197 = arith.subf %189, %196 : vector<8x32xf32>
      %198 = vector.broadcast %195 : vector<8x1xf32> to vector<8x32xf32>
      %199 = arith.subf %189, %198 : vector<8x32xf32>
      %200 = arith.mulf %197, %199 : vector<8x32xf32>
      %cst_73 = arith.constant dense<0.000000e+00> : vector<8xf32>
      %201 = vector.multi_reduction <add>, %200, %cst_73 [1] : vector<8x32xf32> to vector<8xf32>
      %202 = vector.shape_cast %201 : vector<8xf32> to vector<8x1xf32>
      %cst_74 = arith.constant 3.200000e+01 : f32
      %203 = vector.broadcast %cst_74 : f32 to vector<8x1xf32>
      %204 = arith.divf %202, %203 : vector<8x1xf32>
      %205 = vector.broadcast %195 : vector<8x1xf32> to vector<8x32xf32>
      %206 = arith.subf %189, %205 : vector<8x32xf32>
      %cst_75 = arith.constant 9.99999996E-13 : f32
      %207 = vector.broadcast %cst_75 : f32 to vector<8x1xf32>
      %208 = arith.addf %204, %207 : vector<8x1xf32>
      %209 = math.rsqrt %208 : vector<8x1xf32>
      %210 = vector.broadcast %209 : vector<8x1xf32> to vector<8x32xf32>
      %211 = arith.mulf %206, %210 : vector<8x32xf32>
      %212 = vector.broadcast %190 : vector<1x32xf32> to vector<8x32xf32>
      %213 = arith.mulf %211, %212 : vector<8x32xf32>
      %214 = vector.broadcast %191 : vector<1x32xf32> to vector<8x32xf32>
      %215 = arith.addf %213, %214 : vector<8x32xf32>
      %c0_76 = arith.constant 0 : index
      %c0_77 = arith.constant 0 : index
      %216 = vector.load %arg13[%c0_76, %c0_77] : memref<8x32xf32, #tpu.memory_space<vmem>>, vector<8x32xf32>
      tpu.vector_store %arg13[%c0_76, %c0_77], %215 {strides = array<i32>} : memref<8x32xf32, #tpu.memory_space<vmem>>, vector<8x32xf32>,
    } else {
    }
    %c0_2 = arith.constant 0 : index
    %c0_3 = arith.constant 0 : index
    %4 = vector.load %arg13[%c0_2, %c0_3] : memref<8x32xf32, #tpu.memory_space<vmem>>, vector<8x32xf32>
    %c0_4 = arith.constant 0 : index
    %c0_5 = arith.constant 0 : index
    %c0_6 = arith.constant 0 : index
    %5 = vector.load %arg8[%c0_4, %c0_5, %c0_6] : memref<1x8x128xf32, #tpu.memory_space<vmem>>, vector<1x8x128xf32>
    %6 = vector.shape_cast %5 : vector<1x8x128xf32> to vector<8x128xf32>
    %c0_7 = arith.constant 0 : index
    %c0_8 = arith.constant 0 : index
    %c0_9 = arith.constant 0 : index
    %7 = vector.load %arg3[%c0_7, %c0_8, %c0_9] : memref<1x1x8xf32, #tpu.memory_space<vmem>>, vector<1x1x8xf32>
    %8 = vector.shape_cast %7 : vector<1x1x8xf32> to vector<1x8xf32>
    %9 = arith.truncf %4 : vector<8x32xf32> to vector<8x32xbf16>
    %c0_10 = arith.constant 0 : index
    %c0_11 = arith.constant 0 : index
    %c0_12 = arith.constant 0 : index
    %10 = vector.load %arg4[%c0_10, %c0_11, %c0_12] : memref<1x32x96xbf16, #tpu.memory_space<vmem>>, vector<1x32x96xbf16>
    %11 = vector.shape_cast %10 : vector<1x32x96xbf16> to vector<32x96xbf16>
    %cst = arith.constant dense<0.000000e+00> : vector<8x96xf32>
    %12 = tpu.matmul %9, %11, %cst {dimension_numbers = #tpu.dot_dimension_numbers<[1], [0], [0], [1], [0, 0, 1, 1], [], []>} : vector<8x32xbf16>, vector<32x96xbf16>, vector<8x96xf32> -> vector<8x96xf32>
    %13 = vector.extract_strided_slice %6 {offsets = [0, 0], sizes = [1, 96], strides = [1, 1]} : vector<8x128xf32> to vector<1x96xf32>
    %14 = vector.broadcast %13 : vector<1x96xf32> to vector<8x96xf32>
    %15 = arith.addf %12, %14 : vector<8x96xf32>
    %16 = vector.extract_strided_slice %15 {offsets = [0, 0], sizes = [8, 8], strides = [1, 1]} : vector<8x96xf32> to vector<8x8xf32>
    %cst_13 = arith.constant 0.353553385 : f32
    %17 = vector.broadcast %cst_13 : f32 to vector<8x8xf32>
    %18 = arith.mulf %16, %17 : vector<8x8xf32>
    %19 = vector.extract_strided_slice %15 {offsets = [0, 32], sizes = [8, 8], strides = [1, 1]} : vector<8x96xf32> to vector<8x8xf32>
    %20 = vector.extract_strided_slice %15 {offsets = [0, 64], sizes = [8, 8], strides = [1, 1]} : vector<8x96xf32> to vector<8x8xf32>
    "tpu.trace_start"() <{level = 10 : i32, message = "qd,kd->qk"}> : () -> ()
    %cst_14 = arith.constant dense<0.000000e+00> : vector<8x8xf32>
    %21 = tpu.matmul %18, %19, %cst_14 {dimension_numbers = #tpu.dot_dimension_numbers<[1], [1], [0], [0], [0, 0, 1, 0], [], []>} : vector<8x8xf32>, vector<8x8xf32>, vector<8x8xf32> -> vector<8x8xf32>
    "tpu.trace_stop"() : () -> ()
    %22 = vector.broadcast %8 : vector<1x8xf32> to vector<8x8xf32>
    %23 = arith.addf %21, %22 : vector<8x8xf32>
    %cst_15 = arith.constant dense<0xFF800000> : vector<8xf32>
    %24 = vector.multi_reduction <maximumf>, %23, %cst_15 [1] : vector<8x8xf32> to vector<8xf32>
    %25 = vector.shape_cast %24 : vector<8xf32> to vector<8x1xf32>
    %26 = vector.broadcast %25 : vector<8x1xf32> to vector<8x8xf32>
    %27 = arith.subf %23, %26 : vector<8x8xf32>
    %28 = math.exp %27 : vector<8x8xf32>
    %cst_16 = arith.constant dense<0.000000e+00> : vector<8xf32>
    %29 = vector.multi_reduction <add>, %28, %cst_16 [1] : vector<8x8xf32> to vector<8xf32>
    %30 = vector.shape_cast %29 : vector<8xf32> to vector<8x1xf32>
    %31 = tpu.reciprocal %30 {approx = true} : vector<8x1xf32> -> vector<8x1xf32>
    %32 = vector.broadcast %31 : vector<8x1xf32> to vector<8x8xf32>
    %33 = arith.mulf %28, %32 : vector<8x8xf32>
    %cst_17 = arith.constant dense<0.000000e+00> : vector<8x8xf32>
    %34 = tpu.matmul %33, %20, %cst_17 {dimension_numbers = #tpu.dot_dimension_numbers<[1], [0], [0], [1], [0, 0, 1, 1], [], []>} : vector<8x8xf32>, vector<8x8xf32>, vector<8x8xf32> -> vector<8x8xf32>
    %c0_18 = arith.constant 0 : index
    %c0_19 = arith.constant 0 : index
    %35 = vector.load %arg14[%c0_18, %c0_19] : memref<8x32xf32, #tpu.memory_space<vmem>>, vector<8x8xf32>
    tpu.vector_store %arg14[%c0_18, %c0_19], %34 {strides = array<i32>} : memref<8x32xf32, #tpu.memory_space<vmem>>, vector<8x8xf32>,
    %36 = vector.extract_strided_slice %15 {offsets = [0, 8], sizes = [8, 8], strides = [1, 1]} : vector<8x96xf32> to vector<8x8xf32>
    %cst_20 = arith.constant 0.353553385 : f32
    %37 = vector.broadcast %cst_20 : f32 to vector<8x8xf32>
    %38 = arith.mulf %36, %37 : vector<8x8xf32>
    %39 = vector.extract_strided_slice %15 {offsets = [0, 40], sizes = [8, 8], strides = [1, 1]} : vector<8x96xf32> to vector<8x8xf32>
    %40 = vector.extract_strided_slice %15 {offsets = [0, 72], sizes = [8, 8], strides = [1, 1]} : vector<8x96xf32> to vector<8x8xf32>
    "tpu.trace_start"() <{level = 10 : i32, message = "qd,kd->qk"}> : () -> ()
    %cst_21 = arith.constant dense<0.000000e+00> : vector<8x8xf32>
    %41 = tpu.matmul %38, %39, %cst_21 {dimension_numbers = #tpu.dot_dimension_numbers<[1], [1], [0], [0], [0, 0, 1, 0], [], []>} : vector<8x8xf32>, vector<8x8xf32>, vector<8x8xf32> -> vector<8x8xf32>
    "tpu.trace_stop"() : () -> ()
    %42 = vector.broadcast %8 : vector<1x8xf32> to vector<8x8xf32>
    %43 = arith.addf %41, %42 : vector<8x8xf32>
    %cst_22 = arith.constant dense<0xFF800000> : vector<8xf32>
    %44 = vector.multi_reduction <maximumf>, %43, %cst_22 [1] : vector<8x8xf32> to vector<8xf32>
    %45 = vector.shape_cast %44 : vector<8xf32> to vector<8x1xf32>
    %46 = vector.broadcast %45 : vector<8x1xf32> to vector<8x8xf32>
    %47 = arith.subf %43, %46 : vector<8x8xf32>
    %48 = math.exp %47 : vector<8x8xf32>
    %cst_23 = arith.constant dense<0.000000e+00> : vector<8xf32>
    %49 = vector.multi_reduction <add>, %48, %cst_23 [1] : vector<8x8xf32> to vector<8xf32>
    %50 = vector.shape_cast %49 : vector<8xf32> to vector<8x1xf32>
    %51 = tpu.reciprocal %50 {approx = true} : vector<8x1xf32> -> vector<8x1xf32>
    %52 = vector.broadcast %51 : vector<8x1xf32> to vector<8x8xf32>
    %53 = arith.mulf %48, %52 : vector<8x8xf32>
    %cst_24 = arith.constant dense<0.000000e+00> : vector<8x8xf32>
    %54 = tpu.matmul %53, %40, %cst_24 {dimension_numbers = #tpu.dot_dimension_numbers<[1], [0], [0], [1], [0, 0, 1, 1], [], []>} : vector<8x8xf32>, vector<8x8xf32>, vector<8x8xf32> -> vector<8x8xf32>
    %c0_25 = arith.constant 0 : index
    %c8 = arith.constant 8 : index
    %55 = vector.load %arg14[%c0_25, %c8] : memref<8x32xf32, #tpu.memory_space<vmem>>, vector<8x8xf32>
    tpu.vector_store %arg14[%c0_25, %c8], %54 {strides = array<i32>} : memref<8x32xf32, #tpu.memory_space<vmem>>, vector<8x8xf32>,
    %56 = vector.extract_strided_slice %15 {offsets = [0, 16], sizes = [8, 8], strides = [1, 1]} : vector<8x96xf32> to vector<8x8xf32>
    %cst_26 = arith.constant 0.353553385 : f32
    %57 = vector.broadcast %cst_26 : f32 to vector<8x8xf32>
    %58 = arith.mulf %56, %57 : vector<8x8xf32>
    %59 = vector.extract_strided_slice %15 {offsets = [0, 48], sizes = [8, 8], strides = [1, 1]} : vector<8x96xf32> to vector<8x8xf32>
    %60 = vector.extract_strided_slice %15 {offsets = [0, 80], sizes = [8, 8], strides = [1, 1]} : vector<8x96xf32> to vector<8x8xf32>
    "tpu.trace_start"() <{level = 10 : i32, message = "qd,kd->qk"}> : () -> ()
    %cst_27 = arith.constant dense<0.000000e+00> : vector<8x8xf32>
    %61 = tpu.matmul %58, %59, %cst_27 {dimension_numbers = #tpu.dot_dimension_numbers<[1], [1], [0], [0], [0, 0, 1, 0], [], []>} : vector<8x8xf32>, vector<8x8xf32>, vector<8x8xf32> -> vector<8x8xf32>
    "tpu.trace_stop"() : () -> ()
    %62 = vector.broadcast %8 : vector<1x8xf32> to vector<8x8xf32>
    %63 = arith.addf %61, %62 : vector<8x8xf32>
    %cst_28 = arith.constant dense<0xFF800000> : vector<8xf32>
    %64 = vector.multi_reduction <maximumf>, %63, %cst_28 [1] : vector<8x8xf32> to vector<8xf32>
    %65 = vector.shape_cast %64 : vector<8xf32> to vector<8x1xf32>
    %66 = vector.broadcast %65 : vector<8x1xf32> to vector<8x8xf32>
    %67 = arith.subf %63, %66 : vector<8x8xf32>
    %68 = math.exp %67 : vector<8x8xf32>
    %cst_29 = arith.constant dense<0.000000e+00> : vector<8xf32>
    %69 = vector.multi_reduction <add>, %68, %cst_29 [1] : vector<8x8xf32> to vector<8xf32>
    %70 = vector.shape_cast %69 : vector<8xf32> to vector<8x1xf32>
    %71 = tpu.reciprocal %70 {approx = true} : vector<8x1xf32> -> vector<8x1xf32>
    %72 = vector.broadcast %71 : vector<8x1xf32> to vector<8x8xf32>
    %73 = arith.mulf %68, %72 : vector<8x8xf32>
    %cst_30 = arith.constant dense<0.000000e+00> : vector<8x8xf32>
    %74 = tpu.matmul %73, %60, %cst_30 {dimension_numbers = #tpu.dot_dimension_numbers<[1], [0], [0], [1], [0, 0, 1, 1], [], []>} : vector<8x8xf32>, vector<8x8xf32>, vector<8x8xf32> -> vector<8x8xf32>
    %c0_31 = arith.constant 0 : index
    %c16 = arith.constant 16 : index
    %75 = vector.load %arg14[%c0_31, %c16] : memref<8x32xf32, #tpu.memory_space<vmem>>, vector<8x8xf32>
    tpu.vector_store %arg14[%c0_31, %c16], %74 {strides = array<i32>} : memref<8x32xf32, #tpu.memory_space<vmem>>, vector<8x8xf32>,
    %76 = vector.extract_strided_slice %15 {offsets = [0, 24], sizes = [8, 8], strides = [1, 1]} : vector<8x96xf32> to vector<8x8xf32>
    %cst_32 = arith.constant 0.353553385 : f32
    %77 = vector.broadcast %cst_32 : f32 to vector<8x8xf32>
    %78 = arith.mulf %76, %77 : vector<8x8xf32>
    %79 = vector.extract_strided_slice %15 {offsets = [0, 56], sizes = [8, 8], strides = [1, 1]} : vector<8x96xf32> to vector<8x8xf32>
    %80 = vector.extract_strided_slice %15 {offsets = [0, 88], sizes = [8, 8], strides = [1, 1]} : vector<8x96xf32> to vector<8x8xf32>
    "tpu.trace_start"() <{level = 10 : i32, message = "qd,kd->qk"}> : () -> ()
    %cst_33 = arith.constant dense<0.000000e+00> : vector<8x8xf32>
    %81 = tpu.matmul %78, %79, %cst_33 {dimension_numbers = #tpu.dot_dimension_numbers<[1], [1], [0], [0], [0, 0, 1, 0], [], []>} : vector<8x8xf32>, vector<8x8xf32>, vector<8x8xf32> -> vector<8x8xf32>
    "tpu.trace_stop"() : () -> ()
    %82 = vector.broadcast %8 : vector<1x8xf32> to vector<8x8xf32>
    %83 = arith.addf %81, %82 : vector<8x8xf32>
    %cst_34 = arith.constant dense<0xFF800000> : vector<8xf32>
    %84 = vector.multi_reduction <maximumf>, %83, %cst_34 [1] : vector<8x8xf32> to vector<8xf32>
    %85 = vector.shape_cast %84 : vector<8xf32> to vector<8x1xf32>
    %86 = vector.broadcast %85 : vector<8x1xf32> to vector<8x8xf32>
    %87 = arith.subf %83, %86 : vector<8x8xf32>
    %88 = math.exp %87 : vector<8x8xf32>
    %cst_35 = arith.constant dense<0.000000e+00> : vector<8xf32>
    %89 = vector.multi_reduction <add>, %88, %cst_35 [1] : vector<8x8xf32> to vector<8xf32>
    %90 = vector.shape_cast %89 : vector<8xf32> to vector<8x1xf32>
    %91 = tpu.reciprocal %90 {approx = true} : vector<8x1xf32> -> vector<8x1xf32>
    %92 = vector.broadcast %91 : vector<8x1xf32> to vector<8x8xf32>
    %93 = arith.mulf %88, %92 : vector<8x8xf32>
    %cst_36 = arith.constant dense<0.000000e+00> : vector<8x8xf32>
    %94 = tpu.matmul %93, %80, %cst_36 {dimension_numbers = #tpu.dot_dimension_numbers<[1], [0], [0], [1], [0, 0, 1, 1], [], []>} : vector<8x8xf32>, vector<8x8xf32>, vector<8x8xf32> -> vector<8x8xf32>
    %c0_37 = arith.constant 0 : index
    %c24 = arith.constant 24 : index
    %95 = vector.load %arg14[%c0_37, %c24] : memref<8x32xf32, #tpu.memory_space<vmem>>, vector<8x8xf32>
    tpu.vector_store %arg14[%c0_37, %c24], %94 {strides = array<i32>} : memref<8x32xf32, #tpu.memory_space<vmem>>, vector<8x8xf32>,
    %c0_38 = arith.constant 0 : index
    %c0_39 = arith.constant 0 : index
    %96 = vector.load %arg14[%c0_38, %c0_39] : memref<8x32xf32, #tpu.memory_space<vmem>>, vector<8x32xf32>
    %97 = arith.truncf %96 : vector<8x32xf32> to vector<8x32xbf16>
    %c0_40 = arith.constant 0 : index
    %c0_41 = arith.constant 0 : index
    %c0_42 = arith.constant 0 : index
    %98 = vector.load %arg5[%c0_40, %c0_41, %c0_42] : memref<1x32x32xbf16, #tpu.memory_space<vmem>>, vector<1x32x32xbf16>
    %99 = vector.shape_cast %98 : vector<1x32x32xbf16> to vector<32x32xbf16>
    %cst_43 = arith.constant dense<0.000000e+00> : vector<8x32xf32>
    %100 = tpu.matmul %97, %99, %cst_43 {dimension_numbers = #tpu.dot_dimension_numbers<[1], [0], [0], [1], [0, 0, 1, 1], [], []>} : vector<8x32xbf16>, vector<32x32xbf16>, vector<8x32xf32> -> vector<8x32xf32>
    %101 = vector.extract_strided_slice %6 {offsets = [1, 0], sizes = [1, 32], strides = [1, 1]} : vector<8x128xf32> to vector<1x32xf32>
    %102 = vector.broadcast %101 : vector<1x32xf32> to vector<8x32xf32>
    %103 = arith.addf %100, %102 : vector<8x32xf32>
    %104 = arith.addf %103, %4 : vector<8x32xf32>
    %105 = vector.extract_strided_slice %6 {offsets = [2, 0], sizes = [1, 32], strides = [1, 1]} : vector<8x128xf32> to vector<1x32xf32>
    %106 = vector.extract_strided_slice %6 {offsets = [3, 0], sizes = [1, 32], strides = [1, 1]} : vector<8x128xf32> to vector<1x32xf32>
    %cst_44 = arith.constant dense<0.000000e+00> : vector<8xf32>
    %107 = vector.multi_reduction <add>, %104, %cst_44 [1] : vector<8x32xf32> to vector<8xf32>
    %108 = vector.shape_cast %107 : vector<8xf32> to vector<8x1xf32>
    %cst_45 = arith.constant 3.200000e+01 : f32
    %109 = vector.broadcast %cst_45 : f32 to vector<8x1xf32>
    %110 = arith.divf %108, %109 : vector<8x1xf32>
    %111 = vector.broadcast %110 : vector<8x1xf32> to vector<8x32xf32>
    %112 = arith.subf %104, %111 : vector<8x32xf32>
    %113 = vector.broadcast %110 : vector<8x1xf32> to vector<8x32xf32>
    %114 = arith.subf %104, %113 : vector<8x32xf32>
    %115 = arith.mulf %112, %114 : vector<8x32xf32>
    %cst_46 = arith.constant dense<0.000000e+00> : vector<8xf32>
    %116 = vector.multi_reduction <add>, %115, %cst_46 [1] : vector<8x32xf32> to vector<8xf32>
    %117 = vector.shape_cast %116 : vector<8xf32> to vector<8x1xf32>
    %cst_47 = arith.constant 3.200000e+01 : f32
    %118 = vector.broadcast %cst_47 : f32 to vector<8x1xf32>
    %119 = arith.divf %117, %118 : vector<8x1xf32>
    %120 = vector.broadcast %110 : vector<8x1xf32> to vector<8x32xf32>
    %121 = arith.subf %104, %120 : vector<8x32xf32>
    %cst_48 = arith.constant 9.99999996E-13 : f32
    %122 = vector.broadcast %cst_48 : f32 to vector<8x1xf32>
    %123 = arith.addf %119, %122 : vector<8x1xf32>
    %124 = math.rsqrt %123 : vector<8x1xf32>
    %125 = vector.broadcast %124 : vector<8x1xf32> to vector<8x32xf32>
    %126 = arith.mulf %121, %125 : vector<8x32xf32>
    %127 = vector.broadcast %105 : vector<1x32xf32> to vector<8x32xf32>
    %128 = arith.mulf %126, %127 : vector<8x32xf32>
    %129 = vector.broadcast %106 : vector<1x32xf32> to vector<8x32xf32>
    %130 = arith.addf %128, %129 : vector<8x32xf32>
    %131 = arith.truncf %130 : vector<8x32xf32> to vector<8x32xbf16>
    %c0_49 = arith.constant 0 : index
    %c0_50 = arith.constant 0 : index
    %c0_51 = arith.constant 0 : index
    %132 = vector.load %arg6[%c0_49, %c0_50, %c0_51] : memref<1x32x128xbf16, #tpu.memory_space<vmem>>, vector<1x32x128xbf16>
    %133 = vector.shape_cast %132 : vector<1x32x128xbf16> to vector<32x128xbf16>
    %cst_52 = arith.constant dense<0.000000e+00> : vector<8x128xf32>
    %134 = tpu.matmul %131, %133, %cst_52 {dimension_numbers = #tpu.dot_dimension_numbers<[1], [0], [0], [1], [0, 0, 1, 1], [], []>} : vector<8x32xbf16>, vector<32x128xbf16>, vector<8x128xf32> -> vector<8x128xf32>
    %135 = vector.extract_strided_slice %6 {offsets = [4, 0], sizes = [1, 128], strides = [1, 1]} : vector<8x128xf32> to vector<1x128xf32>
    %136 = vector.broadcast %135 : vector<1x128xf32> to vector<8x128xf32>
    %137 = arith.addf %134, %136 : vector<8x128xf32>
    %cst_53 = arith.constant 5.000000e-01 : f32
    %138 = vector.broadcast %cst_53 : f32 to vector<8x128xf32>
    %139 = arith.mulf %138, %137 : vector<8x128xf32>
    %cst_54 = arith.constant 4.471500e-02 : f32
    %140 = vector.broadcast %cst_54 : f32 to vector<8x128xf32>
    %141 = arith.mulf %140, %137 : vector<8x128xf32>
    %142 = arith.mulf %141, %137 : vector<8x128xf32>
    %143 = arith.mulf %142, %137 : vector<8x128xf32>
    %144 = arith.addf %137, %143 : vector<8x128xf32>
    %cst_55 = arith.constant 0.797884583 : f32
    %145 = vector.broadcast %cst_55 : f32 to vector<8x128xf32>
    %146 = arith.mulf %145, %144 : vector<8x128xf32>
    %147 = math.tanh %146 : vector<8x128xf32>
    %cst_56 = arith.constant 1.000000e+00 : f32
    %148 = vector.broadcast %cst_56 : f32 to vector<8x128xf32>
    %149 = arith.addf %148, %147 : vector<8x128xf32>
    %150 = arith.mulf %139, %149 : vector<8x128xf32>
    %151 = arith.truncf %150 : vector<8x128xf32> to vector<8x128xbf16>
    %c0_57 = arith.constant 0 : index
    %c0_58 = arith.constant 0 : index
    %c0_59 = arith.constant 0 : index
    %152 = vector.load %arg7[%c0_57, %c0_58, %c0_59] : memref<1x128x32xbf16, #tpu.memory_space<vmem>>, vector<1x128x32xbf16>
    %153 = vector.shape_cast %152 : vector<1x128x32xbf16> to vector<128x32xbf16>
    %cst_60 = arith.constant dense<0.000000e+00> : vector<8x32xf32>
    %154 = tpu.matmul %151, %153, %cst_60 {dimension_numbers = #tpu.dot_dimension_numbers<[1], [0], [0], [1], [0, 0, 1, 1], [], []>} : vector<8x128xbf16>, vector<128x32xbf16>, vector<8x32xf32> -> vector<8x32xf32>
    %155 = vector.extract_strided_slice %6 {offsets = [5, 0], sizes = [1, 32], strides = [1, 1]} : vector<8x128xf32> to vector<1x32xf32>
    %156 = vector.broadcast %155 : vector<1x32xf32> to vector<8x32xf32>
    %157 = arith.addf %154, %156 : vector<8x32xf32>
    %158 = arith.addf %157, %130 : vector<8x32xf32>
    %159 = vector.extract_strided_slice %6 {offsets = [6, 0], sizes = [1, 32], strides = [1, 1]} : vector<8x128xf32> to vector<1x32xf32>
    %160 = vector.extract_strided_slice %6 {offsets = [7, 0], sizes = [1, 32], strides = [1, 1]} : vector<8x128xf32> to vector<1x32xf32>
    %cst_61 = arith.constant dense<0.000000e+00> : vector<8xf32>
    %161 = vector.multi_reduction <add>, %158, %cst_61 [1] : vector<8x32xf32> to vector<8xf32>
    %162 = vector.shape_cast %161 : vector<8xf32> to vector<8x1xf32>
    %cst_62 = arith.constant 3.200000e+01 : f32
    %163 = vector.broadcast %cst_62 : f32 to vector<8x1xf32>
    %164 = arith.divf %162, %163 : vector<8x1xf32>
    %165 = vector.broadcast %164 : vector<8x1xf32> to vector<8x32xf32>
    %166 = arith.subf %158, %165 : vector<8x32xf32>
    %167 = vector.broadcast %164 : vector<8x1xf32> to vector<8x32xf32>
    %168 = arith.subf %158, %167 : vector<8x32xf32>
    %169 = arith.mulf %166, %168 : vector<8x32xf32>
    %cst_63 = arith.constant dense<0.000000e+00> : vector<8xf32>
    %170 = vector.multi_reduction <add>, %169, %cst_63 [1] : vector<8x32xf32> to vector<8xf32>
    %171 = vector.shape_cast %170 : vector<8xf32> to vector<8x1xf32>
    %cst_64 = arith.constant 3.200000e+01 : f32
    %172 = vector.broadcast %cst_64 : f32 to vector<8x1xf32>
    %173 = arith.divf %171, %172 : vector<8x1xf32>
    %174 = vector.broadcast %164 : vector<8x1xf32> to vector<8x32xf32>
    %175 = arith.subf %158, %174 : vector<8x32xf32>
    %cst_65 = arith.constant 9.99999996E-13 : f32
    %176 = vector.broadcast %cst_65 : f32 to vector<8x1xf32>
    %177 = arith.addf %173, %176 : vector<8x1xf32>
    %178 = math.rsqrt %177 : vector<8x1xf32>
    %179 = vector.broadcast %178 : vector<8x1xf32> to vector<8x32xf32>
    %180 = arith.mulf %175, %179 : vector<8x32xf32>
    %181 = vector.broadcast %159 : vector<1x32xf32> to vector<8x32xf32>
    %182 = arith.mulf %180, %181 : vector<8x32xf32>
    %183 = vector.broadcast %160 : vector<1x32xf32> to vector<8x32xf32>
    %184 = arith.addf %182, %183 : vector<8x32xf32>
    %c0_66 = arith.constant 0 : index
    %c0_67 = arith.constant 0 : index
    %185 = vector.load %arg13[%c0_66, %c0_67] : memref<8x32xf32, #tpu.memory_space<vmem>>, vector<8x32xf32>
    tpu.vector_store %arg13[%c0_66, %c0_67], %184 {strides = array<i32>} : memref<8x32xf32, #tpu.memory_space<vmem>>, vector<8x32xf32>,
    %c1_i32 = arith.constant 1 : i32
    %186 = arith.cmpi eq, %arg1, %c1_i32 : i32
    %187 = arith.extui %186 : i1 to i32
    %c0_i32_68 = arith.constant 0 : i32
    %188 = arith.cmpi ne, %187, %c0_i32_68 : i32
    scf.if %188 {
      %189 = vector.extract_strided_slice %184 {offsets = [0, 0], sizes = [1, 32], strides = [1, 1]} : vector<8x32xf32> to vector<1x32xf32>
      %c0_69 = arith.constant 0 : index
      %c0_70 = arith.constant 0 : index
      %190 = vector.load %arg9[%c0_69, %c0_70] : memref<32x32xf32, #tpu.memory_space<vmem>>, vector<32x32xf32>
      %cst_71 = arith.constant dense<0.000000e+00> : vector<1x32xf32>
      %191 = tpu.matmul %189, %190, %cst_71 {dimension_numbers = #tpu.dot_dimension_numbers<[1], [0], [0], [1], [0, 0, 1, 1], [], []>} : vector<1x32xf32>, vector<32x32xf32>, vector<1x32xf32> -> vector<1x32xf32>
      %192 = vector.extract_strided_slice %0 {offsets = [2, 0], sizes = [1, 32], strides = [1, 1]} : vector<8x128xf32> to vector<1x32xf32>
      %193 = arith.addf %191, %192 : vector<1x32xf32>
      %194 = math.tanh %193 : vector<1x32xf32>
      %c0_72 = arith.constant 0 : index
      %c0_73 = arith.constant 0 : index
      %195 = vector.load %arg10[%c0_72, %c0_73] : memref<32x128xf32, #tpu.memory_space<vmem>>, vector<32x128xf32>
      %cst_74 = arith.constant dense<0.000000e+00> : vector<1x128xf32>
      %196 = tpu.matmul %194, %195, %cst_74 {dimension_numbers = #tpu.dot_dimension_numbers<[1], [0], [0], [1], [0, 0, 1, 1], [], []>} : vector<1x32xf32>, vector<32x128xf32>, vector<1x128xf32> -> vector<1x128xf32>
      %197 = vector.extract_strided_slice %0 {offsets = [3, 0], sizes = [1, 128], strides = [1, 1]} : vector<8x128xf32> to vector<1x128xf32>
      %198 = arith.addf %196, %197 : vector<1x128xf32>
      %199 = vector.shape_cast %198 : vector<1x128xf32> to vector<1x128xf32>
      %200 = vector.broadcast %199 : vector<1x128xf32> to vector<8x128xf32>
      %c0_75 = arith.constant 0 : index
      %c0_76 = arith.constant 0 : index
      %c0_77 = arith.constant 0 : index
      %201 = vector.load %arg12[%c0_75, %c0_76, %c0_77] : memref<1x8x128xf32, #tpu.memory_space<vmem>>, vector<1x8x128xf32>
      %202 = vector.shape_cast %201 : vector<1x8x128xf32> to vector<8x128xf32>
      %203 = vector.shape_cast %200 : vector<8x128xf32> to vector<1x8x128xf32>
      tpu.vector_store %arg12[%c0_75, %c0_76, %c0_77], %203 {strides = array<i32>} : memref<1x8x128xf32, #tpu.memory_space<vmem>>, vector<1x8x128xf32>,
    } else {
    }
    return
  }
  func.func @transform_0(%arg0: i32, %arg1: i32) -> (i32, i32) {
    %c0_i32 = arith.constant 0 : i32
    %c0_i32_0 = arith.constant 0 : i32
    return %arg0, %c0_i32 : i32, i32
  }
  func.func @transform_1(%arg0: i32, %arg1: i32) -> (i32, i32, i32) {
    %c0_i32 = arith.constant 0 : i32
    %c0_i32_0 = arith.constant 0 : i32
    %c0_i32_1 = arith.constant 0 : i32
    return %arg0, %c0_i32, %c0_i32_0 : i32, i32, i32
  }
  func.func @transform_2(%arg0: i32, %arg1: i32) -> (i32, i32, i32) {
    %c0_i32 = arith.constant 0 : i32
    %c0_i32_0 = arith.constant 0 : i32
    %c0_i32_1 = arith.constant 0 : i32
    return %arg1, %c0_i32, %c0_i32_0 : i32, i32, i32
  }
  func.func @transform_3(%arg0: i32, %arg1: i32) -> (i32, i32, i32) {
    %c0_i32 = arith.constant 0 : i32
    %c0_i32_0 = arith.constant 0 : i32
    %c0_i32_1 = arith.constant 0 : i32
    return %arg1, %c0_i32, %c0_i32_0 : i32, i32, i32
  }
  func.func @transform_4(%arg0: i32, %arg1: i32) -> (i32, i32, i32) {
    %c0_i32 = arith.constant 0 : i32
    %c0_i32_0 = arith.constant 0 : i32
    %c0_i32_1 = arith.constant 0 : i32
    return %arg1, %c0_i32, %c0_i32_0 : i32, i32, i32
  }
  func.func @transform_5(%arg0: i32, %arg1: i32) -> (i32, i32, i32) {
    %c0_i32 = arith.constant 0 : i32
    %c0_i32_0 = arith.constant 0 : i32
    %c0_i32_1 = arith.constant 0 : i32
    return %arg1, %c0_i32, %c0_i32_0 : i32, i32, i32
  }
  func.func @transform_6(%arg0: i32, %arg1: i32) -> (i32, i32, i32) {
    %c0_i32 = arith.constant 0 : i32
    %c0_i32_0 = arith.constant 0 : i32
    %c0_i32_1 = arith.constant 0 : i32
    return %arg1, %c0_i32, %c0_i32_0 : i32, i32, i32
  }
  func.func @transform_7(%arg0: i32, %arg1: i32) -> (i32, i32) {
    %c0_i32 = arith.constant 0 : i32
    %c0_i32_0 = arith.constant 0 : i32
    %c0_i32_1 = arith.constant 0 : i32
    return %c0_i32, %c0_i32_0 : i32, i32
  }
  func.func @transform_8(%arg0: i32, %arg1: i32) -> (i32, i32) {
    %c0_i32 = arith.constant 0 : i32
    %c0_i32_0 = arith.constant 0 : i32
    %c0_i32_1 = arith.constant 0 : i32
    return %c0_i32, %c0_i32_0 : i32, i32
  }
  func.func @transform_9(%arg0: i32, %arg1: i32) -> (i32, i32) {
    %c0_i32 = arith.constant 0 : i32
    %c0_i32_0 = arith.constant 0 : i32
    %c0_i32_1 = arith.constant 0 : i32
    return %c0_i32, %c0_i32_0 : i32, i32
  }
  func.func @transform_10(%arg0: i32, %arg1: i32) -> (i32, i32, i32) {
    %c0_i32 = arith.constant 0 : i32
    %c0_i32_0 = arith.constant 0 : i32
    %c0_i32_1 = arith.constant 0 : i32
    return %arg0, %c0_i32, %c0_i32_0 : i32, i32, i32
  }
}

</mosaic_0001>

<llo_original>
// kernel: bert_qp_forward.1
$region0: #{bert_qp_forward.1}
  #allocation0 [shape = 'u32[]', space=smem, size = 0x4, offset = 0x4, fixed_abs, tag = 'smem constant byte address 0x4 - core index']
  #allocation1 [shape = 'u32[144,128]{1,0:T(1,128)}', space=vmem, size = 0x12000, scoped, tag = 'internal scratch']
  #allocation2 [shape = 'f32[8,32]{1,0:T(8,128)}', space=vmem, size = 0x1000, scoped, tag = 'scratch operand']
  #allocation3 [shape = 'f32[8,32]{1,0:T(8,128)}', space=vmem, size = 0x1000, scoped, tag = 'scratch operand']
  %s0 = inlined_call_operand.vmem [shape: f32[16,32], index: 0, kind: input, shape index: {}]
  %s1 = inlined_call_operand.vmem [shape: f32[2,1,8], index: 1, kind: input, shape index: {}]
  %s2 = inlined_call_operand.vmem [shape: bf16[2,32,96], index: 2, kind: input, shape index: {}]
  %s3 = inlined_call_operand.vmem [shape: bf16[2,32,32], index: 3, kind: input, shape index: {}]
  %s4 = inlined_call_operand.vmem [shape: bf16[2,32,128], index: 4, kind: input, shape index: {}]
  %s5 = inlined_call_operand.vmem [shape: bf16[2,128,32], index: 5, kind: input, shape index: {}]
  %s6 = inlined_call_operand.vmem [shape: f32[2,8,128], index: 6, kind: input, shape index: {}]
  %s7 = inlined_call_operand.vmem [shape: f32[32,32], index: 7, kind: input, shape index: {}]
  %s8 = inlined_call_operand.vmem [shape: f32[32,128], index: 8, kind: input, shape index: {}]
  %s9 = inlined_call_operand.vmem [shape: f32[8,128], index: 9, kind: input, shape index: {}]
  %s10 = inlined_call_operand.vmem [shape: f32[2,8,128], index: 10, kind: output, shape index: {}]
  %s11 = sld [smem:[#allocation0]]
  $region81: #{bert_qp_forward.1} parent=0
    _
  %s13 = ssub.s32 1, %s11
  %s14 = scalar_select 0, %s13, %s11
  loop: start=0, step=1, limit=6
  $region2: #{bert_qp_forward.1} parent=0 // loop_pre_header
    _
  $region3: #{bert_qp_forward.1} parent=0 // loop_header
    %s16 = sphi 0, %s20
    %p17 = scmp.ge.s32.totalorder %s16, 6
    %s23 = sphi 0, %s35
    %s24 = sphi 0, %s31
    %s25 = sphi 0, %s23
    %s26 = sphi 0, %s24
    %s27 = sphi 0, %s25
    %s28 = sphi 0, %s26
    %s38 = sphi 0, %s40
    %s41 = sphi 0, %s38
    %s42 = sphi 0, %s41
    %s58 = sphi 0, %s42
    %s64 = sphi 0, %s66
    %s67 = sphi 0, %s64
    %s68 = sphi 0, %s67
    %s84 = sphi 0, %s68
    %s90 = sphi 0, %s92
    %s93 = sphi 0, %s90
    %s94 = sphi 0, %s93
    %s110 = sphi 0, %s94
    %s116 = sphi 0, %s118
    %s119 = sphi 0, %s116
    %s120 = sphi 0, %s119
    %s136 = sphi 0, %s120
    %s142 = sphi 0, %s144
    %s145 = sphi 0, %s142
    %s146 = sphi 0, %s145
    %s162 = sphi 0, %s146
    %s168 = sphi 0, %s170
    %s171 = sphi 0, %s168
    %s172 = sphi 0, %s171
    %s188 = sphi 0, %s172
    %s194 = sphi 0, %s196
    %s197 = sphi 0, %s194
    %s198 = sphi 0, %s197
    %s214 = sphi 0, %s198
    %s218 = sphi 0, %s218
    %s220 = sphi 0, %s218
    %s221 = sphi 0, %s220
    %s235 = sphi 0, %s221
    %s239 = sphi 0, %s239
    %s241 = sphi 0, %s239
    %s242 = sphi 0, %s241
    %s256 = sphi 0, %s242
    %s260 = sphi 0, %s260
    %s262 = sphi 0, %s260
    %s263 = sphi 0, %s262
    %s277 = sphi 0, %s263
    %s283 = sphi 0, %s285
    %s286 = sphi 0, %s283
    %s287 = sphi 0, %s286
    %s303 = sphi 0, %s287
  $region4: #{bert_qp_forward.1} parent=0 // loop_header_branch
    %19 = sbr.rel (%p17) target = $region8
  $region5: #{bert_qp_forward.1} parent=0 // loop_body
    %s21 = ssub.s32 %s16, 1
    %s22 = ssub.s32 %s16, 2
    %s29 = sadd.s32 1, %s24
    %p30 = scmp.ge.s32.totalorder %s29, 2
    %s31 = scalar_select %p30, 0, %s29
    %s32 = sadd.s32 1, %s23
    %s33 = scalar_select %p30, %s32, %s23
    %p34 = scmp.ge.s32.totalorder %s33, 2
    %s35 = scalar_select %p34, 0, %s33
    %s36 = ssub.s32 %s23, %s35
    %p37 = scmp.eq.s32.totalorder %s36, 0
    %s39 = sadd.s32 %s38, 1
    %s40 = scalar_select %p37, %s38, %s39
    %p43 = pneg %p37
    %p44 = scmp.eq.s32.totalorder %s16, 3
    %p45 = por %p43, %p44
    %p46 = scmp.ne.s32.totalorder %s38, %s41
    %p47 = scmp.eq.s32.totalorder %s16, 0
    %p48 = por %p46, %p47
    %p49 = scmp.ne.s32.totalorder %s38, %s41
    %p50 = scmp.eq.s32.totalorder %s21, 3
    %p51 = por %p49, %p50
    %p52 = scmp.ne.s32.totalorder %s41, %s42
    %p53 = scmp.eq.s32.totalorder %s21, 0
    %p54 = por %p52, %p53
    %p55 = scmp.ne.s32.totalorder %s41, %s42
    %p56 = scmp.eq.s32.totalorder %s22, 3
    %p57 = por %p55, %p56
    %p59 = scmp.ne.s32.totalorder %s42, %s58
    %p60 = scmp.eq.s32.totalorder %s22, 0
    %p61 = por %p59, %p60
    %s62 = ssub.s32 %s23, %s35
    %p63 = scmp.eq.s32.totalorder %s62, 0
    %s65 = sadd.s32 %s64, 1
    %s66 = scalar_select %p63, %s64, %s65
    %p69 = pneg %p63
    %p70 = scmp.eq.s32.totalorder %s16, 3
    %p71 = por %p69, %p70
    %p72 = scmp.ne.s32.totalorder %s64, %s67
    %p73 = scmp.eq.s32.totalorder %s16, 0
    %p74 = por %p72, %p73
    %p75 = scmp.ne.s32.totalorder %s64, %s67
    %p76 = scmp.eq.s32.totalorder %s21, 3
    %p77 = por %p75, %p76
    %p78 = scmp.ne.s32.totalorder %s67, %s68
    %p79 = scmp.eq.s32.totalorder %s21, 0
    %p80 = por %p78, %p79
    %p81 = scmp.ne.s32.totalorder %s67, %s68
    %p82 = scmp.eq.s32.totalorder %s22, 3
    %p83 = por %p81, %p82
    %p85 = scmp.ne.s32.totalorder %s68, %s84
    %p86 = scmp.eq.s32.totalorder %s22, 0
    %p87 = por %p85, %p86
    %s88 = ssub.s32 %s24, %s31
    %p89 = scmp.eq.s32.totalorder %s88, 0
    %s91 = sadd.s32 %s90, 1
    %s92 = scalar_select %p89, %s90, %s91
    %p95 = pneg %p89
    %p96 = scmp.eq.s32.totalorder %s16, 3
    %p97 = por %p95, %p96
    %p98 = scmp.ne.s32.totalorder %s90, %s93
    %p99 = scmp.eq.s32.totalorder %s16, 0
    %p100 = por %p98, %p99
    %p101 = scmp.ne.s32.totalorder %s90, %s93
    %p102 = scmp.eq.s32.totalorder %s21, 3
    %p103 = por %p101, %p102
    %p104 = scmp.ne.s32.totalorder %s93, %s94
    %p105 = scmp.eq.s32.totalorder %s21, 0
    %p106 = por %p104, %p105
    %p107 = scmp.ne.s32.totalorder %s93, %s94
    %p108 = scmp.eq.s32.totalorder %s22, 3
    %p109 = por %p107, %p108
    %p111 = scmp.ne.s32.totalorder %s94, %s110
    %p112 = scmp.eq.s32.totalorder %s22, 0
    %p113 = por %p111, %p112
    %s114 = ssub.s32 %s24, %s31
    %p115 = scmp.eq.s32.totalorder %s114, 0
    %s117 = sadd.s32 %s116, 1
    %s118 = scalar_select %p115, %s116, %s117
    %p121 = pneg %p115
    %p122 = scmp.eq.s32.totalorder %s16, 3
    %p123 = por %p121, %p122
    %p124 = scmp.ne.s32.totalorder %s116, %s119
    %p125 = scmp.eq.s32.totalorder %s16, 0
    %p126 = por %p124, %p125
    %p127 = scmp.ne.s32.totalorder %s116, %s119
    %p128 = scmp.eq.s32.totalorder %s21, 3
    %p129 = por %p127, %p128
    %p130 = scmp.ne.s32.totalorder %s119, %s120
    %p131 = scmp.eq.s32.totalorder %s21, 0
    %p132 = por %p130, %p131
    %p133 = scmp.ne.s32.totalorder %s119, %s120
    %p134 = scmp.eq.s32.totalorder %s22, 3
    %p135 = por %p133, %p134
    %p137 = scmp.ne.s32.totalorder %s120, %s136
    %p138 = scmp.eq.s32.totalorder %s22, 0
    %p139 = por %p137, %p138
    %s140 = ssub.s32 %s24, %s31
    %p141 = scmp.eq.s32.totalorder %s140, 0
    %s143 = sadd.s32 %s142, 1
    %s144 = scalar_select %p141, %s142, %s143
    %p147 = pneg %p141
    %p148 = scmp.eq.s32.totalorder %s16, 3
    %p149 = por %p147, %p148
    %p150 = scmp.ne.s32.totalorder %s142, %s145
    %p151 = scmp.eq.s32.totalorder %s16, 0
    %p152 = por %p150, %p151
    %p153 = scmp.ne.s32.totalorder %s142, %s145
    %p154 = scmp.eq.s32.totalorder %s21, 3
    %p155 = por %p153, %p154
    %p156 = scmp.ne.s32.totalorder %s145, %s146
    %p157 = scmp.eq.s32.totalorder %s21, 0
    %p158 = por %p156, %p157
    %p159 = scmp.ne.s32.totalorder %s145, %s146
    %p160 = scmp.eq.s32.totalorder %s22, 3
    %p161 = por %p159, %p160
    %p163 = scmp.ne.s32.totalorder %s146, %s162
    %p164 = scmp.eq.s32.totalorder %s22, 0
    %p165 = por %p163, %p164
    %s166 = ssub.s32 %s24, %s31
    %p167 = scmp.eq.s32.totalorder %s166, 0
    %s169 = sadd.s32 %s168, 1
    %s170 = scalar_select %p167, %s168, %s169
    %p173 = pneg %p167
    %p174 = scmp.eq.s32.totalorder %s16, 3
    %p175 = por %p173, %p174
    %p176 = scmp.ne.s32.totalorder %s168, %s171
    %p177 = scmp.eq.s32.totalorder %s16, 0
    %p178 = por %p176, %p177
    %p179 = scmp.ne.s32.totalorder %s168, %s171
    %p180 = scmp.eq.s32.totalorder %s21, 3
    %p181 = por %p179, %p180
    %p182 = scmp.ne.s32.totalorder %s171, %s172
    %p183 = scmp.eq.s32.totalorder %s21, 0
    %p184 = por %p182, %p183
    %p185 = scmp.ne.s32.totalorder %s171, %s172
    %p186 = scmp.eq.s32.totalorder %s22, 3
    %p187 = por %p185, %p186
    %p189 = scmp.ne.s32.totalorder %s172, %s188
    %p190 = scmp.eq.s32.totalorder %s22, 0
    %p191 = por %p189, %p190
    %s192 = ssub.s32 %s24, %s31
    %p193 = scmp.eq.s32.totalorder %s192, 0
    %s195 = sadd.s32 %s194, 1
    %s196 = scalar_select %p193, %s194, %s195
    %p199 = pneg %p193
    %p200 = scmp.eq.s32.totalorder %s16, 3
    %p201 = por %p199, %p200
    %p202 = scmp.ne.s32.totalorder %s194, %s197
    %p203 = scmp.eq.s32.totalorder %s16, 0
    %p204 = por %p202, %p203
    %p205 = scmp.ne.s32.totalorder %s194, %s197
    %p206 = scmp.eq.s32.totalorder %s21, 3
    %p207 = por %p205, %p206
    %p208 = scmp.ne.s32.totalorder %s197, %s198
    %p209 = scmp.eq.s32.totalorder %s21, 0
    %p210 = por %p208, %p209
    %p211 = scmp.ne.s32.totalorder %s197, %s198
    %p212 = scmp.eq.s32.totalorder %s22, 3
    %p213 = por %p211, %p212
    %p215 = scmp.ne.s32.totalorder %s198, %s214
    %p216 = scmp.eq.s32.totalorder %s22, 0
    %p217 = por %p215, %p216
    %s219 = sadd.s32 %s218, 1
    %p222 = scmp.eq.s32.totalorder %s16, 3
    %p223 = scmp.ne.s32.totalorder %s218, %s220
    %p224 = scmp.eq.s32.totalorder %s16, 0
    %p225 = por %p223, %p224
    %p226 = scmp.ne.s32.totalorder %s218, %s220
    %p227 = scmp.eq.s32.totalorder %s21, 3
    %p228 = por %p226, %p227
    %p229 = scmp.ne.s32.totalorder %s220, %s221
    %p230 = scmp.eq.s32.totalorder %s21, 0
    %p231 = por %p229, %p230
    %p232 = scmp.ne.s32.totalorder %s220, %s221
    %p233 = scmp.eq.s32.totalorder %s22, 3
    %p234 = por %p232, %p233
    %p236 = scmp.ne.s32.totalorder %s221, %s235
    %p237 = scmp.eq.s32.totalorder %s22, 0
    %p238 = por %p236, %p237
    %s240 = sadd.s32 %s239, 1
    %p243 = scmp.eq.s32.totalorder %s16, 3
    %p244 = scmp.ne.s32.totalorder %s239, %s241
    %p245 = scmp.eq.s32.totalorder %s16, 0
    %p246 = por %p244, %p245
    %p247 = scmp.ne.s32.totalorder %s239, %s241
    %p248 = scmp.eq.s32.totalorder %s21, 3
    %p249 = por %p247, %p248
    %p250 = scmp.ne.s32.totalorder %s241, %s242
    %p251 = scmp.eq.s32.totalorder %s21, 0
    %p252 = por %p250, %p251
    %p253 = scmp.ne.s32.totalorder %s241, %s242
    %p254 = scmp.eq.s32.totalorder %s22, 3
    %p255 = por %p253, %p254
    %p257 = scmp.ne.s32.totalorder %s242, %s256
    %p258 = scmp.eq.s32.totalorder %s22, 0
    %p259 = por %p257, %p258
    %s261 = sadd.s32 %s260, 1
    %p264 = scmp.eq.s32.totalorder %s16, 3
    %p265 = scmp.ne.s32.totalorder %s260, %s262
    %p266 = scmp.eq.s32.totalorder %s16, 0
    %p267 = por %p265, %p266
    %p268 = scmp.ne.s32.totalorder %s260, %s262
    %p269 = scmp.eq.s32.totalorder %s21, 3
    %p270 = por %p268, %p269
    %p271 = scmp.ne.s32.totalorder %s262, %s263
    %p272 = scmp.eq.s32.totalorder %s21, 0
    %p273 = por %p271, %p272
    %p274 = scmp.ne.s32.totalorder %s262, %s263
    %p275 = scmp.eq.s32.totalorder %s22, 3
    %p276 = por %p274, %p275
    %p278 = scmp.ne.s32.totalorder %s263, %s277
    %p279 = scmp.eq.s32.totalorder %s22, 0
    %p280 = por %p278, %p279
    %s281 = ssub.s32 %s23, %s35
    %p282 = scmp.eq.s32.totalorder %s281, 0
    %s284 = sadd.s32 %s283, 1
    %s285 = scalar_select %p282, %s283, %s284
    %p288 = pneg %p282
    %p289 = scmp.eq.s32.totalorder %s16, 3
    %p290 = por %p288, %p289
    %p291 = scmp.ne.s32.totalorder %s283, %s286
    %p292 = scmp.eq.s32.totalorder %s16, 0
    %p293 = por %p291, %p292
    %p294 = scmp.ne.s32.totalorder %s283, %s286
    %p295 = scmp.eq.s32.totalorder %s21, 3
    %p296 = por %p294, %p295
    %p297 = scmp.ne.s32.totalorder %s286, %s287
    %p298 = scmp.eq.s32.totalorder %s21, 0
    %p299 = por %p297, %p298
    %p300 = scmp.ne.s32.totalorder %s286, %s287
    %p301 = scmp.eq.s32.totalorder %s22, 3
    %p302 = por %p300, %p301
    %p304 = scmp.ne.s32.totalorder %s287, %s303
    %p305 = scmp.eq.s32.totalorder %s22, 0
    %p306 = por %p304, %p305
    %p307 = scmp.le.s32.totalorder 1, %s16
    %p308 = scmp.lt.s32.totalorder %s16, 5
    %p309 = pnand %p307, %p308
    %p310 = pneg %p309
    // Predicated region
    $region9: #{bert_qp_forward.1} parent=5 // pred_check
      _
    $region10: #{bert_qp_forward.1} parent=5 // pred_check_branch
      %312 = sbr.rel (%p309) target = $region12
    $region11: #{bert_qp_forward.1} parent=5 // pred_region
      %s313 = ssub.s32 %s16, 1
      // Predicated region
      $region13: #{bert_qp_forward.1} parent=11 // pred_check
        %p314 = pneg %p231
      $region14: #{bert_qp_forward.1} parent=11 // pred_check_branch
        %316 = sbr.rel (%p314) target = $region16
      $region15: #{bert_qp_forward.1} parent=11 // pred_region
        _
      $region16: #{bert_qp_forward.1} parent=11 // pred_fallthru
        _
      // Predicated region
      $region17: #{bert_qp_forward.1} parent=11 // pred_check
        %p317 = pneg %p252
      $region18: #{bert_qp_forward.1} parent=11 // pred_check_branch
        %319 = sbr.rel (%p317) target = $region20
      $region19: #{bert_qp_forward.1} parent=11 // pred_region
        _
      $region20: #{bert_qp_forward.1} parent=11 // pred_fallthru
        _
      // Predicated region
      $region21: #{bert_qp_forward.1} parent=11 // pred_check
        %p320 = pneg %p273
      $region22: #{bert_qp_forward.1} parent=11 // pred_check_branch
        %322 = sbr.rel (%p320) target = $region24
      $region23: #{bert_qp_forward.1} parent=11 // pred_region
        _
      $region24: #{bert_qp_forward.1} parent=11 // pred_fallthru
        _
    $region12: #{bert_qp_forward.1} parent=5 // pred_fallthru
      _
    %p323 = scmp.lt.s32.totalorder %s16, 4
    // Predicated region
    $region25: #{bert_qp_forward.1} parent=5 // pred_check
      %p324 = pneg %p323
    $region26: #{bert_qp_forward.1} parent=5 // pred_check_branch
      %326 = sbr.rel (%p324) target = $region28
    $region27: #{bert_qp_forward.1} parent=5 // pred_region
      // Predicated region
      $region29: #{bert_qp_forward.1} parent=27 // pred_check
        %p327 = pneg %p48
      $region30: #{bert_qp_forward.1} parent=27 // pred_check_branch
        %329 = sbr.rel (%p327) target = $region32
      $region31: #{bert_qp_forward.1} parent=27 // pred_region
        %p330 = scmp.lt.s32.totalorder %s23, 1
        %s331 = scalar_select %p330, %s23, 1
        %s332 = smul.addr %s331, 8
        %s333 = scalar_lea.vmem %s0, %s332
      $region32: #{bert_qp_forward.1} parent=27 // pred_fallthru
        _
      // Predicated region
      $region33: #{bert_qp_forward.1} parent=27 // pred_check
        %p334 = pneg %p74
      $region34: #{bert_qp_forward.1} parent=27 // pred_check_branch
        %336 = sbr.rel (%p334) target = $region36
      $region35: #{bert_qp_forward.1} parent=27 // pred_region
        %p337 = scmp.lt.s32.totalorder %s23, 1
        %s338 = scalar_select %p337, %s23, 1
        %s339 = scalar_lea.vmem %s1, %s338
      $region36: #{bert_qp_forward.1} parent=27 // pred_fallthru
        _
      // Predicated region
      $region37: #{bert_qp_forward.1} parent=27 // pred_check
        %p340 = pneg %p100
      $region38: #{bert_qp_forward.1} parent=27 // pred_check_branch
        %342 = sbr.rel (%p340) target = $region40
      $region39: #{bert_qp_forward.1} parent=27 // pred_region
        %p343 = scmp.lt.s32.totalorder %s24, 1
        %s344 = scalar_select %p343, %s24, 1
        %s345 = smul.addr %s344, 4
        %s346 = smul.addr %s345, 4
        %s347 = scalar_lea.vmem %s2, %s346
      $region40: #{bert_qp_forward.1} parent=27 // pred_fallthru
        _
      // Predicated region
      $region41: #{bert_qp_forward.1} parent=27 // pred_check
        %p348 = pneg %p126
      $region42: #{bert_qp_forward.1} parent=27 // pred_check_branch
        %350 = sbr.rel (%p348) target = $region44
      $region43: #{bert_qp_forward.1} parent=27 // pred_region
        %p351 = scmp.lt.s32.totalorder %s24, 1
        %s352 = scalar_select %p351, %s24, 1
        %s353 = smul.addr %s352, 4
        %s354 = smul.addr %s353, 4
        %s355 = scalar_lea.vmem %s3, %s354
      $region44: #{bert_qp_forward.1} parent=27 // pred_fallthru
        _
      // Predicated region
      $region45: #{bert_qp_forward.1} parent=27 // pred_check
        %p356 = pneg %p152
      $region46: #{bert_qp_forward.1} parent=27 // pred_check_branch
        %358 = sbr.rel (%p356) target = $region48
      $region47: #{bert_qp_forward.1} parent=27 // pred_region
        %p359 = scmp.lt.s32.totalorder %s24, 1
        %s360 = scalar_select %p359, %s24, 1
        %s361 = smul.addr %s360, 4
        %s362 = smul.addr %s361, 4
        %s363 = scalar_lea.vmem %s4, %s362
      $region48: #{bert_qp_forward.1} parent=27 // pred_fallthru
        _
      // Predicated region
      $region49: #{bert_qp_forward.1} parent=27 // pred_check
        %p364 = pneg %p178
      $region50: #{bert_qp_forward.1} parent=27 // pred_check_branch
        %366 = sbr.rel (%p364) target = $region52
      $region51: #{bert_qp_forward.1} parent=27 // pred_region
        %p367 = scmp.lt.s32.totalorder %s24, 1
        %s368 = scalar_select %p367, %s24, 1
        %s369 = smul.addr %s368, 16
        %s370 = smul.addr %s369, 4
        %s371 = scalar_lea.vmem %s5, %s370
      $region52: #{bert_qp_forward.1} parent=27 // pred_fallthru
        _
      // Predicated region
      $region53: #{bert_qp_forward.1} parent=27 // pred_check
        %p372 = pneg %p204
      $region54: #{bert_qp_forward.1} parent=27 // pred_check_branch
        %374 = sbr.rel (%p372) target = $region56
      $region55: #{bert_qp_forward.1} parent=27 // pred_region
        %p375 = scmp.lt.s32.totalorder %s24, 1
        %s376 = scalar_select %p375, %s24, 1
        %s377 = smul.addr %s376, 8
        %s378 = scalar_lea.vmem %s6, %s377
      $region56: #{bert_qp_forward.1} parent=27 // pred_fallthru
        _
    $region28: #{bert_qp_forward.1} parent=5 // pred_fallthru
      _
    %p379 = scmp.le.s32.totalorder 1, %s16
    %p380 = scmp.lt.s32.totalorder %s16, 5
    %p381 = pnand %p379, %p380
    %p382 = pneg %p381
    // Predicated region
    $region57: #{bert_qp_forward.1} parent=5 // pred_check
      _
    $region58: #{bert_qp_forward.1} parent=5 // pred_check_branch
      %384 = sbr.rel (%p381) target = $region60
    $region59: #{bert_qp_forward.1} parent=5 // pred_region
      %s385 = ssub.s32 %s16, 1
      %p386 = scmp.lt.s32.totalorder %s25, 1
      %s387 = scalar_select %p386, %s25, 1
      %s388 = smul.addr %s387, 8
      %s389 = scalar_lea.vmem %s0, %s388
      %p390 = pneg %p54
      %p391 = pneg %p51
      %p392 = scmp.lt.s32.totalorder %s25, 1
      %s393 = scalar_select %p392, %s25, 1
      %s394 = scalar_lea.vmem %s1, %s393
      %p395 = pneg %p80
      %p396 = pneg %p77
      %p397 = scmp.lt.s32.totalorder %s26, 1
      %s398 = scalar_select %p397, %s26, 1
      %s399 = smul.addr %s398, 4
      %s400 = smul.addr %s399, 4
      %s401 = scalar_lea.vmem %s2, %s400
      %p402 = pneg %p106
      %p403 = pneg %p103
      %p404 = scmp.lt.s32.totalorder %s26, 1
      %s405 = scalar_select %p404, %s26, 1
      %s406 = smul.addr %s405, 4
      %s407 = smul.addr %s406, 4
      %s408 = scalar_lea.vmem %s3, %s407
      %p409 = pneg %p132
      %p410 = pneg %p129
      %p411 = scmp.lt.s32.totalorder %s26, 1
      %s412 = scalar_select %p411, %s26, 1
      %s413 = smul.addr %s412, 4
      %s414 = smul.addr %s413, 4
      %s415 = scalar_lea.vmem %s4, %s414
      %p416 = pneg %p158
      %p417 = pneg %p155
      %p418 = scmp.lt.s32.totalorder %s26, 1
      %s419 = scalar_select %p418, %s26, 1
      %s420 = smul.addr %s419, 16
      %s421 = smul.addr %s420, 4
      %s422 = scalar_lea.vmem %s5, %s421
      %p423 = pneg %p184
      %p424 = pneg %p181
      %p425 = scmp.lt.s32.totalorder %s26, 1
      %s426 = scalar_select %p425, %s26, 1
      %s427 = smul.addr %s426, 8
      %s428 = scalar_lea.vmem %s6, %s427
      %p429 = pneg %p210
      %p430 = pneg %p207
      %p431 = pneg %p231
      %p432 = pneg %p228
      %p433 = pneg %p252
      %p434 = pneg %p249
      %p435 = pneg %p273
      %p436 = pneg %p270
      %p437 = pneg %p299
      %p438 = pneg %p296
      %p439 = scmp.lt.s32.totalorder %s25, 1
      %s440 = scalar_select %p439, %s25, 1
      %s441 = smul.addr %s440, 8
      %s442 = scalar_lea.vmem %s10, %s441
      %p443 = scmp.lt.s32.totalorder %s25, 1
      %s444 = scalar_select %p443, %s25, 1
      %s445 = smul.addr %s444, 8
      %s446 = scalar_lea.vmem %s0, %s445
      %p447 = scmp.lt.s32.totalorder %s25, 1
      %s448 = scalar_select %p447, %s25, 1
      %s449 = scalar_lea.vmem %s1, %s448
      %p450 = scmp.lt.s32.totalorder %s26, 1
      %s451 = scalar_select %p450, %s26, 1
      %s452 = smul.addr %s451, 4
      %s453 = smul.addr %s452, 4
      %s454 = scalar_lea.vmem %s2, %s453
      %p455 = scmp.lt.s32.totalorder %s26, 1
      %s456 = scalar_select %p455, %s26, 1
      %s457 = smul.addr %s456, 4
      %s458 = smul.addr %s457, 4
      %s459 = scalar_lea.vmem %s3, %s458
      %p460 = scmp.lt.s32.totalorder %s26, 1
      %s461 = scalar_select %p460, %s26, 1
      %s462 = smul.addr %s461, 4
      %s463 = smul.addr %s462, 4
      %s464 = scalar_lea.vmem %s4, %s463
      %p465 = scmp.lt.s32.totalorder %s26, 1
      %s466 = scalar_select %p465, %s26, 1
      %s467 = smul.addr %s466, 16
      %s468 = smul.addr %s467, 4
      %s469 = scalar_lea.vmem %s5, %s468
      %p470 = scmp.lt.s32.totalorder %s26, 1
      %s471 = scalar_select %p470, %s26, 1
      %s472 = smul.addr %s471, 8
      %s473 = scalar_lea.vmem %s6, %s472
      %p474 = scmp.lt.s32.totalorder %s25, 1
      %s475 = scalar_select %p474, %s25, 1
      %s476 = smul.addr %s475, 8
      %s477 = scalar_lea.vmem %s10, %s476
      %v479 = vld [vmem:[%s9] sm:$0xff]
      %p480 = scmp.eq.s32.totalorder %s26, 0
      // Predicated region
      $region61: #{bert_qp_forward.1} parent=59 // pred_check
        %p481 = pneg %p480
      $region62: #{bert_qp_forward.1} parent=59 // pred_check_branch
        %483 = sbr.rel (%p481) target = $region64
      $region63: #{bert_qp_forward.1} parent=59 // pred_region
        %v484 = vld [vmem:[%s446] sm:$0xff]
        %vm485 = vcmask 261120
        %v486 = vsel %vm485, %v484, 0.0
        %487 = vadd.xlane.f32.xlu0 %v486
        %v488 = vpop.xlane.xlu0 %487
        %v489 = vrcp.pop 32.0
        %v490 = vmul.f32 %v488, %v489
        %v491 = vsub.f32 %v484, %v490
        %v492 = vmul.f32 %v491, %v491
        %v493 = vsel %vm485, %v492, 0.0
        %494 = vadd.xlane.f32.xlu0 %v493
        %v495 = vpop.xlane.xlu0 %494
        %v496 = vmul.f32 %v495, %v489
        %v497 = vadd.f32 %v496, 1e-12
        %v498 = vrsqrt.pop %v497
        %v499 = vmul.f32 %v491, %v498
        %v500 = vlaneseq
        %v501 = vshrl.u32 %v500, 7
        %v502 = vsub.s32 0, %v501
        %v503 = vrot.slane %v479, %v502
        %v504 = vmul.f32 %v499, %v503
        %v505 = vlaneseq
        %v506 = vshrl.u32 %v505, 7
        %v507 = vsub.s32 1, %v506
        %v508 = vrot.slane %v479, %v507
        %v509 = vadd.f32 %v504, %v508
        %510 = vst.msk [vmem:[#allocation2] sm:$0xff] %vm485, %v509
      $region64: #{bert_qp_forward.1} parent=59 // pred_fallthru
        _
      %v511 = vld [vmem:[#allocation2] sm:$0xff]
      %v512 = vld [vmem:[%s473] sm:$0xff]
      %v513 = vld [vmem:[%s449] sm:$0x1]
      %v514 = vpack.c.bf16 %v511, %v511
      %v515 = vld [vmem:[%s454] sm:$0xf]
      %v516 = vld [vmem:[%s454 + $0x4] sm:$0xf]
      %v517 = vld [vmem:[%s454 + $0x8] sm:$0xf]
      %v518 = vld [vmem:[%s454 + $0xc] sm:$0xf]
      %v519 = vlaneseq
      %v520 = vshrl.u32 %v519, 7
      %v521 = vsub.s32 0, %v520
      %v522 = vrot.slane %v512, %v521
      %v527 = vunpack.c.l.b16 %v515
      %v528 = vunpack.c.l.b16 %v516
      %v529 = vunpack.c.l.b16 %v517
      %v530 = vunpack.c.l.b16 %v518
      %v531 = vpack.c.b16 %v528, %v527
      %v532 = vpack.c.b16 %v530, %v529
      %vm535 = vcmask 261120
      %v537 = vsel %vm535, %v514, 0
      %539 = vmatprep.subr.bf16.mxu0 0
      %540 = vmatpush1.bf16.msra.mxu0 %v531
      %541 = vmatprep.subr.bf16.mxu0 0
      %542 = vmatpush1.bf16.msra.mxu0 %v532
      %543 = vmatprep.subr.bf16.mxu0 0
      %544 = vmatpush1.bf16.msra.mxu0 0
      %545 = vmatprep.subr.bf16.mxu0 0
      %546 = vmatpush1.bf16.msra.mxu0 0
      %547 = vmatprep.subr.bf16.mxu0 0
      %548 = vmatpush1.bf16.msra.mxu0 0
      %549 = vmatprep.subr.bf16.mxu0 0
      %550 = vmatpush1.bf16.msra.mxu0 0
      %551 = vmatprep.subr.bf16.mxu0 0
      %552 = vmatpush1.bf16.msra.mxu0 0
      %553 = vmatprep.subr.bf16.mxu0 0
      %554 = vmatpush1.bf16.msra.mxu0 0
      %555 = vmatprep.subr.bf16.mxu0 0
      %556 = vmatpush1.bf16.msra.mxu0 0
      %557 = vmatprep.subr.bf16.mxu0 0
      %558 = vmatpush1.bf16.msra.mxu0 0
      %559 = vmatprep.subr.bf16.mxu0 0
      %560 = vmatpush1.bf16.msra.mxu0 0
      %561 = vmatprep.subr.bf16.mxu0 0
      %562 = vmatpush1.bf16.msra.mxu0 0
      %563 = vmatprep.subr.bf16.mxu0 0
      %564 = vmatpush1.bf16.msra.mxu0 0
      %565 = vmatprep.subr.bf16.mxu0 0
      %566 = vmatpush1.bf16.msra.mxu0 0
      %567 = vmatprep.subr.bf16.mxu0 0
      %568 = vmatpush1.bf16.msra.mxu0 0
      %569 = vmatprep.subr.bf16.mxu0 0
      %570 = vmatpush1.bf16.msra.mxu0 0
      %571 = vmatprep.mubr.bf16.mxu0 0
      %572 = vmatmul.mubr.bf16.gmra.mrb[0].mxu0 %v537
      %v573 = vpop.f32.mrb[0].mxu0
      %v574 = vadd.f32 %v522, %v573
      %v575 = vpop.f32.mrb[0].mxu0
      %v576 = vpop.f32.mrb[0].mxu0
      %v577 = vpop.f32.mrb[0].mxu0
      %578 = vdwg.mxu0
      %v579 = vmul.f32 %v574, 0.35355338
      %v581 = vlaneseq
      %v582 = vshrl.u32 %v581, 7
      %v583 = vsub.s32 0, %v582
      %v584 = vrot.slane %v513, %v583
      %587 = vrot.lane.b32.xlu0 %v574, 96
      %v588 = vpop.permute.xlu0 %587
      %vm589 = vcmask 64512
      %v591 = vsel %vm589, %v579, 0
      %v593 = vsel %vm589, %v588, 0
      %595 = vmatprep.subr.mxu0 0.0
      %596 = vmatpush1.xpose.msra.mxu0 %v593
      %597 = vmatprep.subr.mxu0 0.0
      %598 = vmatpush1.xpose.msra.mxu0 0.0
      %599 = vmatprep.subr.mxu0 0.0
      %600 = vmatpush1.xpose.msra.mxu0 0.0
      %601 = vmatprep.subr.mxu0 0.0
      %602 = vmatpush1.xpose.msra.mxu0 0.0
      %603 = vmatprep.subr.mxu0 0.0
      %604 = vmatpush1.xpose.msra.mxu0 0.0
      %605 = vmatprep.subr.mxu0 0.0
      %606 = vmatpush1.xpose.msra.mxu0 0.0
      %607 = vmatprep.subr.mxu0 0.0
      %608 = vmatpush1.xpose.msra.mxu0 0.0
      %609 = vmatprep.subr.mxu0 0.0
      %610 = vmatpush1.xpose.msra.mxu0 0.0
      %611 = vmatprep.subr.mxu0 0.0
      %612 = vmatpush1.xpose.msra.mxu0 0.0
      %613 = vmatprep.subr.mxu0 0.0
      %614 = vmatpush1.xpose.msra.mxu0 0.0
      %615 = vmatprep.subr.mxu0 0.0
      %616 = vmatpush1.xpose.msra.mxu0 0.0
      %617 = vmatprep.subr.mxu0 0.0
      %618 = vmatpush1.xpose.msra.mxu0 0.0
      %619 = vmatprep.subr.mxu0 0.0
      %620 = vmatpush1.xpose.msra.mxu0 0.0
      %621 = vmatprep.subr.mxu0 0.0
      %622 = vmatpush1.xpose.msra.mxu0 0.0
      %623 = vmatprep.subr.mxu0 0.0
      %624 = vmatpush1.xpose.msra.mxu0 0.0
      %625 = vmatprep.subr.mxu0 0.0
      %626 = vmatpush1.xpose.msra.mxu0 0.0
      %627 = vmatprep.subr.mxu0 0.0
      %628 = vmatpush1.xpose.msra.mxu0 0.0
      %629 = vmatprep.subr.mxu0 0.0
      %630 = vmatpush1.xpose.msra.mxu0 0.0
      %631 = vmatprep.subr.mxu0 0.0
      %632 = vmatpush1.xpose.msra.mxu0 0.0
      %633 = vmatprep.subr.mxu0 0.0
      %634 = vmatpush1.xpose.msra.mxu0 0.0
      %635 = vmatprep.subr.mxu0 0.0
      %636 = vmatpush1.xpose.msra.mxu0 0.0
      %637 = vmatprep.subr.mxu0 0.0
      %638 = vmatpush1.xpose.msra.mxu0 0.0
      %639 = vmatprep.subr.mxu0 0.0
      %640 = vmatpush1.xpose.msra.mxu0 0.0
      %641 = vmatprep.subr.mxu0 0.0
      %642 = vmatpush1.xpose.msra.mxu0 0.0
      %643 = vmatprep.subr.mxu0 0.0
      %644 = vmatpush1.xpose.msra.mxu0 0.0
      %645 = vmatprep.subr.mxu0 0.0
      %646 = vmatpush1.xpose.msra.mxu0 0.0
      %647 = vmatprep.subr.mxu0 0.0
      %648 = vmatpush1.xpose.msra.mxu0 0.0
      %649 = vmatprep.subr.mxu0 0.0
      %650 = vmatpush1.xpose.msra.mxu0 0.0
      %651 = vmatprep.subr.mxu0 0.0
      %652 = vmatpush1.xpose.msra.mxu0 0.0
      %653 = vmatprep.subr.mxu0 0.0
      %654 = vmatpush1.xpose.msra.mxu0 0.0
      %655 = vmatprep.subr.mxu0 0.0
      %656 = vmatpush1.xpose.msra.mxu0 0.0
      %657 = vmatprep.subr.mxu0 0.0
      %658 = vmatpush1.xpose.msra.mxu0 0.0
      %659 = vmatprep.mubr.f32.mxu0 0.0
      %660 = vmatmul.mubr.f32.gmra.mrb[0].mxu0 %v591
      %v661 = vpop.f32.mrb[0].mxu0
      %v662 = vadd.f32 %v584, %v661
      %v663 = vpop.f32.mrb[0].mxu0
      %664 = vdwg.mxu0
      %v665 = vsel %vm589, %v662, -inf
      %666 = vmax.xlane.f32.xlu0 %v665
      %v667 = vpop.xlane.xlu0 %666
      %v668 = vsub.f32 %v662, %v667
      %v669 = vmul.f32 %v668, 1.442695
      %v670 = vpow.pop %v669
      %v671 = vsel %vm589, %v670, 0.0
      %672 = vadd.xlane.f32.xlu0 %v671
      %v673 = vpop.xlane.xlu0 %672
      %v674 = vrcp.pop %v673
      %v675 = vmul.f32 %v670, %v674
      %676 = vrot.lane.b32.xlu0 %v574, 64
      %v677 = vpop.permute.xlu0 %676
      %v680 = vsel %vm589, %v675, 0
      %682 = vmatprep.subr.mxu0 0.0
      %683 = vmatpush1.msra.mxu0 %v677
      %684 = vmatprep.subr.mxu0 0.0
      %685 = vmatpush1.msra.mxu0 0.0
      %686 = vmatprep.subr.mxu0 0.0
      %687 = vmatpush1.msra.mxu0 0.0
      %688 = vmatprep.subr.mxu0 0.0
      %689 = vmatpush1.msra.mxu0 0.0
      %690 = vmatprep.subr.mxu0 0.0
      %691 = vmatpush1.msra.mxu0 0.0
      %692 = vmatprep.subr.mxu0 0.0
      %693 = vmatpush1.msra.mxu0 0.0
      %694 = vmatprep.subr.mxu0 0.0
      %695 = vmatpush1.msra.mxu0 0.0
      %696 = vmatprep.subr.mxu0 0.0
      %697 = vmatpush1.msra.mxu0 0.0
      %698 = vmatprep.subr.mxu0 0.0
      %699 = vmatpush1.msra.mxu0 0.0
      %700 = vmatprep.subr.mxu0 0.0
      %701 = vmatpush1.msra.mxu0 0.0
      %702 = vmatprep.subr.mxu0 0.0
      %703 = vmatpush1.msra.mxu0 0.0
      %704 = vmatprep.subr.mxu0 0.0
      %705 = vmatpush1.msra.mxu0 0.0
      %706 = vmatprep.subr.mxu0 0.0
      %707 = vmatpush1.msra.mxu0 0.0
      %708 = vmatprep.subr.mxu0 0.0
      %709 = vmatpush1.msra.mxu0 0.0
      %710 = vmatprep.subr.mxu0 0.0
      %711 = vmatpush1.msra.mxu0 0.0
      %712 = vmatprep.subr.mxu0 0.0
      %713 = vmatpush1.msra.mxu0 0.0
      %714 = vmatprep.subr.mxu0 0.0
      %715 = vmatpush1.msra.mxu0 0.0
      %716 = vmatprep.subr.mxu0 0.0
      %717 = vmatpush1.msra.mxu0 0.0
      %718 = vmatprep.subr.mxu0 0.0
      %719 = vmatpush1.msra.mxu0 0.0
      %720 = vmatprep.subr.mxu0 0.0
      %721 = vmatpush1.msra.mxu0 0.0
      %722 = vmatprep.subr.mxu0 0.0
      %723 = vmatpush1.msra.mxu0 0.0
      %724 = vmatprep.subr.mxu0 0.0
      %725 = vmatpush1.msra.mxu0 0.0
      %726 = vmatprep.subr.mxu0 0.0
      %727 = vmatpush1.msra.mxu0 0.0
      %728 = vmatprep.subr.mxu0 0.0
      %729 = vmatpush1.msra.mxu0 0.0
      %730 = vmatprep.subr.mxu0 0.0
      %731 = vmatpush1.msra.mxu0 0.0
      %732 = vmatprep.subr.mxu0 0.0
      %733 = vmatpush1.msra.mxu0 0.0
      %734 = vmatprep.subr.mxu0 0.0
      %735 = vmatpush1.msra.mxu0 0.0
      %736 = vmatprep.subr.mxu0 0.0
      %737 = vmatpush1.msra.mxu0 0.0
      %738 = vmatprep.subr.mxu0 0.0
      %739 = vmatpush1.msra.mxu0 0.0
      %740 = vmatprep.subr.mxu0 0.0
      %741 = vmatpush1.msra.mxu0 0.0
      %742 = vmatprep.subr.mxu0 0.0
      %743 = vmatpush1.msra.mxu0 0.0
      %744 = vmatprep.subr.mxu0 0.0
      %745 = vmatpush1.msra.mxu0 0.0
      %746 = vmatprep.mubr.f32.mxu0 0.0
      %747 = vmatmul.mubr.f32.gmra.mrb[0].mxu0 %v680
      %v748 = vpop.f32.mrb[0].mxu0
      %v749 = vadd.f32 0.0, %v748
      %v750 = vpop.f32.mrb[0].mxu0
      %751 = vdwg.mxu0
      %752 = vst.msk [vmem:[#allocation3] sm:$0xff] %vm589, %v749
      %753 = vrot.lane.b32.xlu0 %v579, 120
      %v754 = vpop.permute.xlu0 %753
      %755 = vrot.lane.b32.xlu0 %v574, 88
      %v756 = vpop.permute.xlu0 %755
      %v757 = vsel %vm589, %v754, 0
      %v759 = vsel %vm589, %v756, 0
      %761 = vmatprep.subr.mxu0 0.0
      %762 = vmatpush1.xpose.msra.mxu0 %v759
      %763 = vmatprep.subr.mxu0 0.0
      %764 = vmatpush1.xpose.msra.mxu0 0.0
      %765 = vmatprep.subr.mxu0 0.0
      %766 = vmatpush1.xpose.msra.mxu0 0.0
      %767 = vmatprep.subr.mxu0 0.0
      %768 = vmatpush1.xpose.msra.mxu0 0.0
      %769 = vmatprep.subr.mxu0 0.0
      %770 = vmatpush1.xpose.msra.mxu0 0.0
      %771 = vmatprep.subr.mxu0 0.0
      %772 = vmatpush1.xpose.msra.mxu0 0.0
      %773 = vmatprep.subr.mxu0 0.0
      %774 = vmatpush1.xpose.msra.mxu0 0.0
      %775 = vmatprep.subr.mxu0 0.0
      %776 = vmatpush1.xpose.msra.mxu0 0.0
      %777 = vmatprep.subr.mxu0 0.0
      %778 = vmatpush1.xpose.msra.mxu0 0.0
      %779 = vmatprep.subr.mxu0 0.0
      %780 = vmatpush1.xpose.msra.mxu0 0.0
      %781 = vmatprep.subr.mxu0 0.0
      %782 = vmatpush1.xpose.msra.mxu0 0.0
      %783 = vmatprep.subr.mxu0 0.0
      %784 = vmatpush1.xpose.msra.mxu0 0.0
      %785 = vmatprep.subr.mxu0 0.0
      %786 = vmatpush1.xpose.msra.mxu0 0.0
      %787 = vmatprep.subr.mxu0 0.0
      %788 = vmatpush1.xpose.msra.mxu0 0.0
      %789 = vmatprep.subr.mxu0 0.0
      %790 = vmatpush1.xpose.msra.mxu0 0.0
      %791 = vmatprep.subr.mxu0 0.0
      %792 = vmatpush1.xpose.msra.mxu0 0.0
      %793 = vmatprep.subr.mxu0 0.0
      %794 = vmatpush1.xpose.msra.mxu0 0.0
      %795 = vmatprep.subr.mxu0 0.0
      %796 = vmatpush1.xpose.msra.mxu0 0.0
      %797 = vmatprep.subr.mxu0 0.0
      %798 = vmatpush1.xpose.msra.mxu0 0.0
      %799 = vmatprep.subr.mxu0 0.0
      %800 = vmatpush1.xpose.msra.mxu0 0.0
      %801 = vmatprep.subr.mxu0 0.0
      %802 = vmatpush1.xpose.msra.mxu0 0.0
      %803 = vmatprep.subr.mxu0 0.0
      %804 = vmatpush1.xpose.msra.mxu0 0.0
      %805 = vmatprep.subr.mxu0 0.0
      %806 = vmatpush1.xpose.msra.mxu0 0.0
      %807 = vmatprep.subr.mxu0 0.0
      %808 = vmatpush1.xpose.msra.mxu0 0.0
      %809 = vmatprep.subr.mxu0 0.0
      %810 = vmatpush1.xpose.msra.mxu0 0.0
      %811 = vmatprep.subr.mxu0 0.0
      %812 = vmatpush1.xpose.msra.mxu0 0.0
      %813 = vmatprep.subr.mxu0 0.0
      %814 = vmatpush1.xpose.msra.mxu0 0.0
      %815 = vmatprep.subr.mxu0 0.0
      %816 = vmatpush1.xpose.msra.mxu0 0.0
      %817 = vmatprep.subr.mxu0 0.0
      %818 = vmatpush1.xpose.msra.mxu0 0.0
      %819 = vmatprep.subr.mxu0 0.0
      %820 = vmatpush1.xpose.msra.mxu0 0.0
      %821 = vmatprep.subr.mxu0 0.0
      %822 = vmatpush1.xpose.msra.mxu0 0.0
      %823 = vmatprep.subr.mxu0 0.0
      %824 = vmatpush1.xpose.msra.mxu0 0.0
      %825 = vmatprep.mubr.f32.mxu0 0.0
      %826 = vmatmul.mubr.f32.gmra.mrb[0].mxu0 %v757
      %v827 = vpop.f32.mrb[0].mxu0
      %v828 = vadd.f32 %v584, %v827
      %v829 = vpop.f32.mrb[0].mxu0
      %830 = vdwg.mxu0
      %v831 = vsel %vm589, %v828, -inf
      %832 = vmax.xlane.f32.xlu0 %v831
      %v833 = vpop.xlane.xlu0 %832
      %v834 = vsub.f32 %v828, %v833
      %v835 = vmul.f32 %v834, 1.442695
      %v836 = vpow.pop %v835
      %v837 = vsel %vm589, %v836, 0.0
      %838 = vadd.xlane.f32.xlu0 %v837
      %v839 = vpop.xlane.xlu0 %838
      %v840 = vrcp.pop %v839
      %v841 = vmul.f32 %v836, %v840
      %842 = vrot.lane.b32.xlu0 %v574, 56
      %v843 = vpop.permute.xlu0 %842
      %v846 = vsel %vm589, %v841, 0
      %848 = vmatprep.subr.mxu0 0.0
      %849 = vmatpush1.msra.mxu0 %v843
      %850 = vmatprep.subr.mxu0 0.0
      %851 = vmatpush1.msra.mxu0 0.0
      %852 = vmatprep.subr.mxu0 0.0
      %853 = vmatpush1.msra.mxu0 0.0
      %854 = vmatprep.subr.mxu0 0.0
      %855 = vmatpush1.msra.mxu0 0.0
      %856 = vmatprep.subr.mxu0 0.0
      %857 = vmatpush1.msra.mxu0 0.0
      %858 = vmatprep.subr.mxu0 0.0
      %859 = vmatpush1.msra.mxu0 0.0
      %860 = vmatprep.subr.mxu0 0.0
      %861 = vmatpush1.msra.mxu0 0.0
      %862 = vmatprep.subr.mxu0 0.0
      %863 = vmatpush1.msra.mxu0 0.0
      %864 = vmatprep.subr.mxu0 0.0
      %865 = vmatpush1.msra.mxu0 0.0
      %866 = vmatprep.subr.mxu0 0.0
      %867 = vmatpush1.msra.mxu0 0.0
      %868 = vmatprep.subr.mxu0 0.0
      %869 = vmatpush1.msra.mxu0 0.0
      %870 = vmatprep.subr.mxu0 0.0
      %871 = vmatpush1.msra.mxu0 0.0
      %872 = vmatprep.subr.mxu0 0.0
      %873 = vmatpush1.msra.mxu0 0.0
      %874 = vmatprep.subr.mxu0 0.0
      %875 = vmatpush1.msra.mxu0 0.0
      %876 = vmatprep.subr.mxu0 0.0
      %877 = vmatpush1.msra.mxu0 0.0
      %878 = vmatprep.subr.mxu0 0.0
      %879 = vmatpush1.msra.mxu0 0.0
      %880 = vmatprep.subr.mxu0 0.0
      %881 = vmatpush1.msra.mxu0 0.0
      %882 = vmatprep.subr.mxu0 0.0
      %883 = vmatpush1.msra.mxu0 0.0
      %884 = vmatprep.subr.mxu0 0.0
      %885 = vmatpush1.msra.mxu0 0.0
      %886 = vmatprep.subr.mxu0 0.0
      %887 = vmatpush1.msra.mxu0 0.0
      %888 = vmatprep.subr.mxu0 0.0
      %889 = vmatpush1.msra.mxu0 0.0
      %890 = vmatprep.subr.mxu0 0.0
      %891 = vmatpush1.msra.mxu0 0.0
      %892 = vmatprep.subr.mxu0 0.0
      %893 = vmatpush1.msra.mxu0 0.0
      %894 = vmatprep.subr.mxu0 0.0
      %895 = vmatpush1.msra.mxu0 0.0
      %896 = vmatprep.subr.mxu0 0.0
      %897 = vmatpush1.msra.mxu0 0.0
      %898 = vmatprep.subr.mxu0 0.0
      %899 = vmatpush1.msra.mxu0 0.0
      %900 = vmatprep.subr.mxu0 0.0
      %901 = vmatpush1.msra.mxu0 0.0
      %902 = vmatprep.subr.mxu0 0.0
      %903 = vmatpush1.msra.mxu0 0.0
      %904 = vmatprep.subr.mxu0 0.0
      %905 = vmatpush1.msra.mxu0 0.0
      %906 = vmatprep.subr.mxu0 0.0
      %907 = vmatpush1.msra.mxu0 0.0
      %908 = vmatprep.subr.mxu0 0.0
      %909 = vmatpush1.msra.mxu0 0.0
      %910 = vmatprep.subr.mxu0 0.0
      %911 = vmatpush1.msra.mxu0 0.0
      %912 = vmatprep.mubr.f32.mxu0 0.0
      %913 = vmatmul.mubr.f32.gmra.mrb[0].mxu0 %v846
      %v914 = vpop.f32.mrb[0].mxu0
      %v915 = vadd.f32 0.0, %v914
      %v916 = vpop.f32.mrb[0].mxu0
      %917 = vdwg.mxu0
      %919 = vrot.lane.b32.xlu0 %v915, 8
      %v920 = vpop.permute.xlu0 %919
      %vm922 = vcmask 130112
      %923 = vst.msk [vmem:[#allocation3] sm:$0xff] %vm922, %v920
      %924 = vrot.lane.b32.xlu0 %v579, 112
      %v925 = vpop.permute.xlu0 %924
      %926 = vrot.lane.b32.xlu0 %v574, 80
      %v927 = vpop.permute.xlu0 %926
      %v928 = vsel %vm589, %v925, 0
      %v930 = vsel %vm589, %v927, 0
      %932 = vmatprep.subr.mxu0 0.0
      %933 = vmatpush1.xpose.msra.mxu0 %v930
      %934 = vmatprep.subr.mxu0 0.0
      %935 = vmatpush1.xpose.msra.mxu0 0.0
      %936 = vmatprep.subr.mxu0 0.0
      %937 = vmatpush1.xpose.msra.mxu0 0.0
      %938 = vmatprep.subr.mxu0 0.0
      %939 = vmatpush1.xpose.msra.mxu0 0.0
      %940 = vmatprep.subr.mxu0 0.0
      %941 = vmatpush1.xpose.msra.mxu0 0.0
      %942 = vmatprep.subr.mxu0 0.0
      %943 = vmatpush1.xpose.msra.mxu0 0.0
      %944 = vmatprep.subr.mxu0 0.0
      %945 = vmatpush1.xpose.msra.mxu0 0.0
      %946 = vmatprep.subr.mxu0 0.0
      %947 = vmatpush1.xpose.msra.mxu0 0.0
      %948 = vmatprep.subr.mxu0 0.0
      %949 = vmatpush1.xpose.msra.mxu0 0.0
      %950 = vmatprep.subr.mxu0 0.0
      %951 = vmatpush1.xpose.msra.mxu0 0.0
      %952 = vmatprep.subr.mxu0 0.0
      %953 = vmatpush1.xpose.msra.mxu0 0.0
      %954 = vmatprep.subr.mxu0 0.0
      %955 = vmatpush1.xpose.msra.mxu0 0.0
      %956 = vmatprep.subr.mxu0 0.0
      %957 = vmatpush1.xpose.msra.mxu0 0.0
      %958 = vmatprep.subr.mxu0 0.0
      %959 = vmatpush1.xpose.msra.mxu0 0.0
      %960 = vmatprep.subr.mxu0 0.0
      %961 = vmatpush1.xpose.msra.mxu0 0.0
      %962 = vmatprep.subr.mxu0 0.0
      %963 = vmatpush1.xpose.msra.mxu0 0.0
      %964 = vmatprep.subr.mxu0 0.0
      %965 = vmatpush1.xpose.msra.mxu0 0.0
      %966 = vmatprep.subr.mxu0 0.0
      %967 = vmatpush1.xpose.msra.mxu0 0.0
      %968 = vmatprep.subr.mxu0 0.0
      %969 = vmatpush1.xpose.msra.mxu0 0.0
      %970 = vmatprep.subr.mxu0 0.0
      %971 = vmatpush1.xpose.msra.mxu0 0.0
      %972 = vmatprep.subr.mxu0 0.0
      %973 = vmatpush1.xpose.msra.mxu0 0.0
      %974 = vmatprep.subr.mxu0 0.0
      %975 = vmatpush1.xpose.msra.mxu0 0.0
      %976 = vmatprep.subr.mxu0 0.0
      %977 = vmatpush1.xpose.msra.mxu0 0.0
      %978 = vmatprep.subr.mxu0 0.0
      %979 = vmatpush1.xpose.msra.mxu0 0.0
      %980 = vmatprep.subr.mxu0 0.0
      %981 = vmatpush1.xpose.msra.mxu0 0.0
      %982 = vmatprep.subr.mxu0 0.0
      %983 = vmatpush1.xpose.msra.mxu0 0.0
      %984 = vmatprep.subr.mxu0 0.0
      %985 = vmatpush1.xpose.msra.mxu0 0.0
      %986 = vmatprep.subr.mxu0 0.0
      %987 = vmatpush1.xpose.msra.mxu0 0.0
      %988 = vmatprep.subr.mxu0 0.0
      %989 = vmatpush1.xpose.msra.mxu0 0.0
      %990 = vmatprep.subr.mxu0 0.0
      %991 = vmatpush1.xpose.msra.mxu0 0.0
      %992 = vmatprep.subr.mxu0 0.0
      %993 = vmatpush1.xpose.msra.mxu0 0.0
      %994 = vmatprep.subr.mxu0 0.0
      %995 = vmatpush1.xpose.msra.mxu0 0.0
      %996 = vmatprep.mubr.f32.mxu0 0.0
      %997 = vmatmul.mubr.f32.gmra.mrb[0].mxu0 %v928
      %v998 = vpop.f32.mrb[0].mxu0
      %v999 = vadd.f32 %v584, %v998
      %v1000 = vpop.f32.mrb[0].mxu0
      %1001 = vdwg.mxu0
      %v1002 = vsel %vm589, %v999, -inf
      %1003 = vmax.xlane.f32.xlu0 %v1002
      %v1004 = vpop.xlane.xlu0 %1003
      %v1005 = vsub.f32 %v999, %v1004
      %v1006 = vmul.f32 %v1005, 1.442695
      %v1007 = vpow.pop %v1006
      %v1008 = vsel %vm589, %v1007, 0.0
      %1009 = vadd.xlane.f32.xlu0 %v1008
      %v1010 = vpop.xlane.xlu0 %1009
      %v1011 = vrcp.pop %v1010
      %v1012 = vmul.f32 %v1007, %v1011
      %1013 = vrot.lane.b32.xlu0 %v574, 48
      %v1014 = vpop.permute.xlu0 %1013
      %v1017 = vsel %vm589, %v1012, 0
      %1019 = vmatprep.subr.mxu0 0.0
      %1020 = vmatpush1.msra.mxu0 %v1014
      %1021 = vmatprep.subr.mxu0 0.0
      %1022 = vmatpush1.msra.mxu0 0.0
      %1023 = vmatprep.subr.mxu0 0.0
      %1024 = vmatpush1.msra.mxu0 0.0
      %1025 = vmatprep.subr.mxu0 0.0
      %1026 = vmatpush1.msra.mxu0 0.0
      %1027 = vmatprep.subr.mxu0 0.0
      %1028 = vmatpush1.msra.mxu0 0.0
      %1029 = vmatprep.subr.mxu0 0.0
      %1030 = vmatpush1.msra.mxu0 0.0
      %1031 = vmatprep.subr.mxu0 0.0
      %1032 = vmatpush1.msra.mxu0 0.0
      %1033 = vmatprep.subr.mxu0 0.0
      %1034 = vmatpush1.msra.mxu0 0.0
      %1035 = vmatprep.subr.mxu0 0.0
      %1036 = vmatpush1.msra.mxu0 0.0
      %1037 = vmatprep.subr.mxu0 0.0
      %1038 = vmatpush1.msra.mxu0 0.0
      %1039 = vmatprep.subr.mxu0 0.0
      %1040 = vmatpush1.msra.mxu0 0.0
      %1041 = vmatprep.subr.mxu0 0.0
      %1042 = vmatpush1.msra.mxu0 0.0
      %1043 = vmatprep.subr.mxu0 0.0
      %1044 = vmatpush1.msra.mxu0 0.0
      %1045 = vmatprep.subr.mxu0 0.0
      %1046 = vmatpush1.msra.mxu0 0.0
      %1047 = vmatprep.subr.mxu0 0.0
      %1048 = vmatpush1.msra.mxu0 0.0
      %1049 = vmatprep.subr.mxu0 0.0
      %1050 = vmatpush1.msra.mxu0 0.0
      %1051 = vmatprep.subr.mxu0 0.0
      %1052 = vmatpush1.msra.mxu0 0.0
      %1053 = vmatprep.subr.mxu0 0.0
      %1054 = vmatpush1.msra.mxu0 0.0
      %1055 = vmatprep.subr.mxu0 0.0
      %1056 = vmatpush1.msra.mxu0 0.0
      %1057 = vmatprep.subr.mxu0 0.0
      %1058 = vmatpush1.msra.mxu0 0.0
      %1059 = vmatprep.subr.mxu0 0.0
      %1060 = vmatpush1.msra.mxu0 0.0
      %1061 = vmatprep.subr.mxu0 0.0
      %1062 = vmatpush1.msra.mxu0 0.0
      %1063 = vmatprep.subr.mxu0 0.0
      %1064 = vmatpush1.msra.mxu0 0.0
      %1065 = vmatprep.subr.mxu0 0.0
      %1066 = vmatpush1.msra.mxu0 0.0
      %1067 = vmatprep.subr.mxu0 0.0
      %1068 = vmatpush1.msra.mxu0 0.0
      %1069 = vmatprep.subr.mxu0 0.0
      %1070 = vmatpush1.msra.mxu0 0.0
      %1071 = vmatprep.subr.mxu0 0.0
      %1072 = vmatpush1.msra.mxu0 0.0
      %1073 = vmatprep.subr.mxu0 0.0
      %1074 = vmatpush1.msra.mxu0 0.0
      %1075 = vmatprep.subr.mxu0 0.0
      %1076 = vmatpush1.msra.mxu0 0.0
      %1077 = vmatprep.subr.mxu0 0.0
      %1078 = vmatpush1.msra.mxu0 0.0
      %1079 = vmatprep.subr.mxu0 0.0
      %1080 = vmatpush1.msra.mxu0 0.0
      %1081 = vmatprep.subr.mxu0 0.0
      %1082 = vmatpush1.msra.mxu0 0.0
      %1083 = vmatprep.mubr.f32.mxu0 0.0
      %1084 = vmatmul.mubr.f32.gmra.mrb[0].mxu0 %v1017
      %v1085 = vpop.f32.mrb[0].mxu0
      %v1086 = vadd.f32 0.0, %v1085
      %v1087 = vpop.f32.mrb[0].mxu0
      %1088 = vdwg.mxu0
      %1090 = vrot.lane.b32.xlu0 %v1086, 16
      %v1091 = vpop.permute.xlu0 %1090
      %vm1093 = vcmask 195712
      %1094 = vst.msk [vmem:[#allocation3] sm:$0xff] %vm1093, %v1091
      %1095 = vrot.lane.b32.xlu0 %v579, 104
      %v1096 = vpop.permute.xlu0 %1095
      %1097 = vrot.lane.b32.xlu0 %v574, 72
      %v1098 = vpop.permute.xlu0 %1097
      %v1099 = vsel %vm589, %v1096, 0
      %v1101 = vsel %vm589, %v1098, 0
      %1103 = vmatprep.subr.mxu0 0.0
      %1104 = vmatpush1.xpose.msra.mxu0 %v1101
      %1105 = vmatprep.subr.mxu0 0.0
      %1106 = vmatpush1.xpose.msra.mxu0 0.0
      %1107 = vmatprep.subr.mxu0 0.0
      %1108 = vmatpush1.xpose.msra.mxu0 0.0
      %1109 = vmatprep.subr.mxu0 0.0
      %1110 = vmatpush1.xpose.msra.mxu0 0.0
      %1111 = vmatprep.subr.mxu0 0.0
      %1112 = vmatpush1.xpose.msra.mxu0 0.0
      %1113 = vmatprep.subr.mxu0 0.0
      %1114 = vmatpush1.xpose.msra.mxu0 0.0
      %1115 = vmatprep.subr.mxu0 0.0
      %1116 = vmatpush1.xpose.msra.mxu0 0.0
      %1117 = vmatprep.subr.mxu0 0.0
      %1118 = vmatpush1.xpose.msra.mxu0 0.0
      %1119 = vmatprep.subr.mxu0 0.0
      %1120 = vmatpush1.xpose.msra.mxu0 0.0
      %1121 = vmatprep.subr.mxu0 0.0
      %1122 = vmatpush1.xpose.msra.mxu0 0.0
      %1123 = vmatprep.subr.mxu0 0.0
      %1124 = vmatpush1.xpose.msra.mxu0 0.0
      %1125 = vmatprep.subr.mxu0 0.0
      %1126 = vmatpush1.xpose.msra.mxu0 0.0
      %1127 = vmatprep.subr.mxu0 0.0
      %1128 = vmatpush1.xpose.msra.mxu0 0.0
      %1129 = vmatprep.subr.mxu0 0.0
      %1130 = vmatpush1.xpose.msra.mxu0 0.0
      %1131 = vmatprep.subr.mxu0 0.0
      %1132 = vmatpush1.xpose.msra.mxu0 0.0
      %1133 = vmatprep.subr.mxu0 0.0
      %1134 = vmatpush1.xpose.msra.mxu0 0.0
      %1135 = vmatprep.subr.mxu0 0.0
      %1136 = vmatpush1.xpose.msra.mxu0 0.0
      %1137 = vmatprep.subr.mxu0 0.0
      %1138 = vmatpush1.xpose.msra.mxu0 0.0
      %1139 = vmatprep.subr.mxu0 0.0
      %1140 = vmatpush1.xpose.msra.mxu0 0.0
      %1141 = vmatprep.subr.mxu0 0.0
      %1142 = vmatpush1.xpose.msra.mxu0 0.0
      %1143 = vmatprep.subr.mxu0 0.0
      %1144 = vmatpush1.xpose.msra.mxu0 0.0
      %1145 = vmatprep.subr.mxu0 0.0
      %1146 = vmatpush1.xpose.msra.mxu0 0.0
      %1147 = vmatprep.subr.mxu0 0.0
      %1148 = vmatpush1.xpose.msra.mxu0 0.0
      %1149 = vmatprep.subr.mxu0 0.0
      %1150 = vmatpush1.xpose.msra.mxu0 0.0
      %1151 = vmatprep.subr.mxu0 0.0
      %1152 = vmatpush1.xpose.msra.mxu0 0.0
      %1153 = vmatprep.subr.mxu0 0.0
      %1154 = vmatpush1.xpose.msra.mxu0 0.0
      %1155 = vmatprep.subr.mxu0 0.0
      %1156 = vmatpush1.xpose.msra.mxu0 0.0
      %1157 = vmatprep.subr.mxu0 0.0
      %1158 = vmatpush1.xpose.msra.mxu0 0.0
      %1159 = vmatprep.subr.mxu0 0.0
      %1160 = vmatpush1.xpose.msra.mxu0 0.0
      %1161 = vmatprep.subr.mxu0 0.0
      %1162 = vmatpush1.xpose.msra.mxu0 0.0
      %1163 = vmatprep.subr.mxu0 0.0
      %1164 = vmatpush1.xpose.msra.mxu0 0.0
      %1165 = vmatprep.subr.mxu0 0.0
      %1166 = vmatpush1.xpose.msra.mxu0 0.0
      %1167 = vmatprep.mubr.f32.mxu0 0.0
      %1168 = vmatmul.mubr.f32.gmra.mrb[0].mxu0 %v1099
      %v1169 = vpop.f32.mrb[0].mxu0
      %v1170 = vadd.f32 %v584, %v1169
      %v1171 = vpop.f32.mrb[0].mxu0
      %1172 = vdwg.mxu0
      %v1173 = vsel %vm589, %v1170, -inf
      %1174 = vmax.xlane.f32.xlu0 %v1173
      %v1175 = vpop.xlane.xlu0 %1174
      %v1176 = vsub.f32 %v1170, %v1175
      %v1177 = vmul.f32 %v1176, 1.442695
      %v1178 = vpow.pop %v1177
      %v1179 = vsel %vm589, %v1178, 0.0
      %1180 = vadd.xlane.f32.xlu0 %v1179
      %v1181 = vpop.xlane.xlu0 %1180
      %v1182 = vrcp.pop %v1181
      %v1183 = vmul.f32 %v1178, %v1182
      %1184 = vrot.lane.b32.xlu0 %v574, 40
      %v1185 = vpop.permute.xlu0 %1184
      %v1188 = vsel %vm589, %v1183, 0
      %1190 = vmatprep.subr.mxu0 0.0
      %1191 = vmatpush1.msra.mxu0 %v1185
      %1192 = vmatprep.subr.mxu0 0.0
      %1193 = vmatpush1.msra.mxu0 0.0
      %1194 = vmatprep.subr.mxu0 0.0
      %1195 = vmatpush1.msra.mxu0 0.0
      %1196 = vmatprep.subr.mxu0 0.0
      %1197 = vmatpush1.msra.mxu0 0.0
      %1198 = vmatprep.subr.mxu0 0.0
      %1199 = vmatpush1.msra.mxu0 0.0
      %1200 = vmatprep.subr.mxu0 0.0
      %1201 = vmatpush1.msra.mxu0 0.0
      %1202 = vmatprep.subr.mxu0 0.0
      %1203 = vmatpush1.msra.mxu0 0.0
      %1204 = vmatprep.subr.mxu0 0.0
      %1205 = vmatpush1.msra.mxu0 0.0
      %1206 = vmatprep.subr.mxu0 0.0
      %1207 = vmatpush1.msra.mxu0 0.0
      %1208 = vmatprep.subr.mxu0 0.0
      %1209 = vmatpush1.msra.mxu0 0.0
      %1210 = vmatprep.subr.mxu0 0.0
      %1211 = vmatpush1.msra.mxu0 0.0
      %1212 = vmatprep.subr.mxu0 0.0
      %1213 = vmatpush1.msra.mxu0 0.0
      %1214 = vmatprep.subr.mxu0 0.0
      %1215 = vmatpush1.msra.mxu0 0.0
      %1216 = vmatprep.subr.mxu0 0.0
      %1217 = vmatpush1.msra.mxu0 0.0
      %1218 = vmatprep.subr.mxu0 0.0
      %1219 = vmatpush1.msra.mxu0 0.0
      %1220 = vmatprep.subr.mxu0 0.0
      %1221 = vmatpush1.msra.mxu0 0.0
      %1222 = vmatprep.subr.mxu0 0.0
      %1223 = vmatpush1.msra.mxu0 0.0
      %1224 = vmatprep.subr.mxu0 0.0
      %1225 = vmatpush1.msra.mxu0 0.0
      %1226 = vmatprep.subr.mxu0 0.0
      %1227 = vmatpush1.msra.mxu0 0.0
      %1228 = vmatprep.subr.mxu0 0.0
      %1229 = vmatpush1.msra.mxu0 0.0
      %1230 = vmatprep.subr.mxu0 0.0
      %1231 = vmatpush1.msra.mxu0 0.0
      %1232 = vmatprep.subr.mxu0 0.0
      %1233 = vmatpush1.msra.mxu0 0.0
      %1234 = vmatprep.subr.mxu0 0.0
      %1235 = vmatpush1.msra.mxu0 0.0
      %1236 = vmatprep.subr.mxu0 0.0
      %1237 = vmatpush1.msra.mxu0 0.0
      %1238 = vmatprep.subr.mxu0 0.0
      %1239 = vmatpush1.msra.mxu0 0.0
      %1240 = vmatprep.subr.mxu0 0.0
      %1241 = vmatpush1.msra.mxu0 0.0
      %1242 = vmatprep.subr.mxu0 0.0
      %1243 = vmatpush1.msra.mxu0 0.0
      %1244 = vmatprep.subr.mxu0 0.0
      %1245 = vmatpush1.msra.mxu0 0.0
      %1246 = vmatprep.subr.mxu0 0.0
      %1247 = vmatpush1.msra.mxu0 0.0
      %1248 = vmatprep.subr.mxu0 0.0
      %1249 = vmatpush1.msra.mxu0 0.0
      %1250 = vmatprep.subr.mxu0 0.0
      %1251 = vmatpush1.msra.mxu0 0.0
      %1252 = vmatprep.subr.mxu0 0.0
      %1253 = vmatpush1.msra.mxu0 0.0
      %1254 = vmatprep.mubr.f32.mxu0 0.0
      %1255 = vmatmul.mubr.f32.gmra.mrb[0].mxu0 %v1188
      %v1256 = vpop.f32.mrb[0].mxu0
      %v1257 = vadd.f32 0.0, %v1256
      %v1258 = vpop.f32.mrb[0].mxu0
      %1259 = vdwg.mxu0
      %1261 = vrot.lane.b32.xlu0 %v1257, 24
      %v1262 = vpop.permute.xlu0 %1261
      %vm1264 = vcmask 261312
      %1265 = vst.msk [vmem:[#allocation3] sm:$0xff] %vm1264, %v1262
      %v1266 = vld [vmem:[#allocation3] sm:$0xff]
      %v1267 = vpack.c.bf16 %v1266, %v1266
      %v1268 = vld [vmem:[%s459] sm:$0xf]
      %v1269 = vld [vmem:[%s459 + $0x4] sm:$0xf]
      %v1270 = vld [vmem:[%s459 + $0x8] sm:$0xf]
      %v1271 = vld [vmem:[%s459 + $0xc] sm:$0xf]
      %v1272 = vlaneseq
      %v1273 = vshrl.u32 %v1272, 7
      %v1274 = vsub.s32 1, %v1273
      %v1275 = vrot.slane %v512, %v1274
      %v1280 = vunpack.c.l.b16 %v1268
      %v1281 = vunpack.c.l.b16 %v1269
      %v1282 = vunpack.c.l.b16 %v1270
      %v1283 = vunpack.c.l.b16 %v1271
      %v1284 = vpack.c.b16 %v1281, %v1280
      %v1285 = vpack.c.b16 %v1283, %v1282
      %v1289 = vsel %vm535, %v1267, 0
      %1291 = vmatprep.subr.bf16.mxu0 0
      %1292 = vmatpush1.bf16.msra.mxu0 %v1284
      %1293 = vmatprep.subr.bf16.mxu0 0
      %1294 = vmatpush1.bf16.msra.mxu0 %v1285
      %1295 = vmatprep.subr.bf16.mxu0 0
      %1296 = vmatpush1.bf16.msra.mxu0 0
      %1297 = vmatprep.subr.bf16.mxu0 0
      %1298 = vmatpush1.bf16.msra.mxu0 0
      %1299 = vmatprep.subr.bf16.mxu0 0
      %1300 = vmatpush1.bf16.msra.mxu0 0
      %1301 = vmatprep.subr.bf16.mxu0 0
      %1302 = vmatpush1.bf16.msra.mxu0 0
      %1303 = vmatprep.subr.bf16.mxu0 0
      %1304 = vmatpush1.bf16.msra.mxu0 0
      %1305 = vmatprep.subr.bf16.mxu0 0
      %1306 = vmatpush1.bf16.msra.mxu0 0
      %1307 = vmatprep.subr.bf16.mxu0 0
      %1308 = vmatpush1.bf16.msra.mxu0 0
      %1309 = vmatprep.subr.bf16.mxu0 0
      %1310 = vmatpush1.bf16.msra.mxu0 0
      %1311 = vmatprep.subr.bf16.mxu0 0
      %1312 = vmatpush1.bf16.msra.mxu0 0
      %1313 = vmatprep.subr.bf16.mxu0 0
      %1314 = vmatpush1.bf16.msra.mxu0 0
      %1315 = vmatprep.subr.bf16.mxu0 0
      %1316 = vmatpush1.bf16.msra.mxu0 0
      %1317 = vmatprep.subr.bf16.mxu0 0
      %1318 = vmatpush1.bf16.msra.mxu0 0
      %1319 = vmatprep.subr.bf16.mxu0 0
      %1320 = vmatpush1.bf16.msra.mxu0 0
      %1321 = vmatprep.subr.bf16.mxu0 0
      %1322 = vmatpush1.bf16.msra.mxu0 0
      %1323 = vmatprep.mubr.bf16.mxu0 0
      %1324 = vmatmul.mubr.bf16.gmra.mrb[0].mxu0 %v1289
      %v1325 = vpop.f32.mrb[0].mxu0
      %v1326 = vadd.f32 %v1275, %v1325
      %v1327 = vpop.f32.mrb[0].mxu0
      %v1328 = vpop.f32.mrb[0].mxu0
      %v1329 = vpop.f32.mrb[0].mxu0
      %1330 = vdwg.mxu0
      %v1331 = vadd.f32 %v1326, %v511
      %v1332 = vsel %vm535, %v1331, 0.0
      %1333 = vadd.xlane.f32.xlu0 %v1332
      %v1334 = vpop.xlane.xlu0 %1333
      %v1335 = vrcp.pop 32.0
      %v1336 = vmul.f32 %v1334, %v1335
      %v1337 = vsub.f32 %v1331, %v1336
      %v1338 = vmul.f32 %v1337, %v1337
      %v1339 = vsel %vm535, %v1338, 0.0
      %1340 = vadd.xlane.f32.xlu0 %v1339
      %v1341 = vpop.xlane.xlu0 %1340
      %v1342 = vmul.f32 %v1341, %v1335
      %v1343 = vadd.f32 %v1342, 1e-12
      %v1344 = vrsqrt.pop %v1343
      %v1345 = vmul.f32 %v1337, %v1344
      %v1346 = vlaneseq
      %v1347 = vshrl.u32 %v1346, 7
      %v1348 = vsub.s32 2, %v1347
      %v1349 = vrot.slane %v512, %v1348
      %v1350 = vmul.f32 %v1345, %v1349
      %v1351 = vlaneseq
      %v1352 = vshrl.u32 %v1351, 7
      %v1353 = vsub.s32 3, %v1352
      %v1354 = vrot.slane %v512, %v1353
      %v1355 = vadd.f32 %v1350, %v1354
      %v1356 = vpack.c.bf16 %v1355, %v1355
      %v1357 = vld [vmem:[%s464] sm:$0xf]
      %v1358 = vld [vmem:[%s464 + $0x4] sm:$0xf]
      %v1359 = vld [vmem:[%s464 + $0x8] sm:$0xf]
      %v1360 = vld [vmem:[%s464 + $0xc] sm:$0xf]
      %v1361 = vlaneseq
      %v1362 = vshrl.u32 %v1361, 7
      %v1363 = vsub.s32 4, %v1362
      %v1364 = vrot.slane %v512, %v1363
      %v1369 = vunpack.c.l.b16 %v1357
      %v1370 = vunpack.c.l.b16 %v1358
      %v1371 = vunpack.c.l.b16 %v1359
      %v1372 = vunpack.c.l.b16 %v1360
      %v1373 = vpack.c.b16 %v1370, %v1369
      %v1374 = vpack.c.b16 %v1372, %v1371
      %v1378 = vsel %vm535, %v1356, 0
      %1380 = vmatprep.subr.bf16.mxu0 0
      %1381 = vmatpush1.bf16.msra.mxu0 %v1373
      %1382 = vmatprep.subr.bf16.mxu0 0
      %1383 = vmatpush1.bf16.msra.mxu0 %v1374
      %1384 = vmatprep.subr.bf16.mxu0 0
      %1385 = vmatpush1.bf16.msra.mxu0 0
      %1386 = vmatprep.subr.bf16.mxu0 0
      %1387 = vmatpush1.bf16.msra.mxu0 0
      %1388 = vmatprep.subr.bf16.mxu0 0
      %1389 = vmatpush1.bf16.msra.mxu0 0
      %1390 = vmatprep.subr.bf16.mxu0 0
      %1391 = vmatpush1.bf16.msra.mxu0 0
      %1392 = vmatprep.subr.bf16.mxu0 0
      %1393 = vmatpush1.bf16.msra.mxu0 0
      %1394 = vmatprep.subr.bf16.mxu0 0
      %1395 = vmatpush1.bf16.msra.mxu0 0
      %1396 = vmatprep.subr.bf16.mxu0 0
      %1397 = vmatpush1.bf16.msra.mxu0 0
      %1398 = vmatprep.subr.bf16.mxu0 0
      %1399 = vmatpush1.bf16.msra.mxu0 0
      %1400 = vmatprep.subr.bf16.mxu0 0
      %1401 = vmatpush1.bf16.msra.mxu0 0
      %1402 = vmatprep.subr.bf16.mxu0 0
      %1403 = vmatpush1.bf16.msra.mxu0 0
      %1404 = vmatprep.subr.bf16.mxu0 0
      %1405 = vmatpush1.bf16.msra.mxu0 0
      %1406 = vmatprep.subr.bf16.mxu0 0
      %1407 = vmatpush1.bf16.msra.mxu0 0
      %1408 = vmatprep.subr.bf16.mxu0 0
      %1409 = vmatpush1.bf16.msra.mxu0 0
      %1410 = vmatprep.subr.bf16.mxu0 0
      %1411 = vmatpush1.bf16.msra.mxu0 0
      %1412 = vmatprep.mubr.bf16.mxu0 0
      %1413 = vmatmul.mubr.bf16.gmra.mrb[0].mxu0 %v1378
      %v1414 = vpop.f32.mrb[0].mxu0
      %v1415 = vadd.f32 %v1364, %v1414
      %v1416 = vpop.f32.mrb[0].mxu0
      %v1417 = vpop.f32.mrb[0].mxu0
      %v1418 = vpop.f32.mrb[0].mxu0
      %1419 = vdwg.mxu0
      %v1420 = vmul.f32 %v1415, 0.5
      %v1421 = vmul.f32 %v1415, 0.044715
      %v1422 = vmul.f32 %v1421, %v1415
      %v1423 = vmul.f32 %v1422, %v1415
      %v1424 = vadd.f32 %v1415, %v1423
      %v1425 = vmul.f32 %v1424, 0.7978846
      %v1426 = vtanh.pop %v1425
      %v1427 = vadd.f32 %v1426, 1.0
      %v1428 = vmul.f32 %v1420, %v1427
      %v1429 = vpack.c.bf16 %v1428, %v1428
      %v1430 = vld [vmem:[%s469] sm:$0xf]
      %v1431 = vld [vmem:[%s469 + $0x4] sm:$0xf]
      %v1432 = vld [vmem:[%s469 + $0x8] sm:$0xf]
      %v1433 = vld [vmem:[%s469 + $0xc] sm:$0xf]
      %v1434 = vld [vmem:[%s469 + $0x10] sm:$0xf]
      %v1435 = vld [vmem:[%s469 + $0x14] sm:$0xf]
      %v1436 = vld [vmem:[%s469 + $0x18] sm:$0xf]
      %v1437 = vld [vmem:[%s469 + $0x1c] sm:$0xf]
      %v1438 = vld [vmem:[%s469 + $0x20] sm:$0xf]
      %v1439 = vld [vmem:[%s469 + $0x24] sm:$0xf]
      %v1440 = vld [vmem:[%s469 + $0x28] sm:$0xf]
      %v1441 = vld [vmem:[%s469 + $0x2c] sm:$0xf]
      %v1442 = vld [vmem:[%s469 + $0x30] sm:$0xf]
      %v1443 = vld [vmem:[%s469 + $0x34] sm:$0xf]
      %v1444 = vld [vmem:[%s469 + $0x38] sm:$0xf]
      %v1445 = vld [vmem:[%s469 + $0x3c] sm:$0xf]
      %v1446 = vlaneseq
      %v1447 = vshrl.u32 %v1446, 7
      %v1448 = vsub.s32 5, %v1447
      %v1449 = vrot.slane %v512, %v1448
      %v1466 = vunpack.c.l.b16 %v1430
      %v1467 = vunpack.c.l.b16 %v1431
      %v1468 = vunpack.c.l.b16 %v1432
      %v1469 = vunpack.c.l.b16 %v1433
      %v1470 = vunpack.c.l.b16 %v1434
      %v1471 = vunpack.c.l.b16 %v1435
      %v1472 = vunpack.c.l.b16 %v1436
      %v1473 = vunpack.c.l.b16 %v1437
      %v1474 = vunpack.c.l.b16 %v1438
      %v1475 = vunpack.c.l.b16 %v1439
      %v1476 = vunpack.c.l.b16 %v1440
      %v1477 = vunpack.c.l.b16 %v1441
      %v1478 = vunpack.c.l.b16 %v1442
      %v1479 = vunpack.c.l.b16 %v1443
      %v1480 = vunpack.c.l.b16 %v1444
      %v1481 = vunpack.c.l.b16 %v1445
      %v1482 = vpack.c.b16 %v1467, %v1466
      %v1483 = vpack.c.b16 %v1469, %v1468
      %v1484 = vpack.c.b16 %v1471, %v1470
      %v1485 = vpack.c.b16 %v1473, %v1472
      %v1486 = vpack.c.b16 %v1475, %v1474
      %v1487 = vpack.c.b16 %v1477, %v1476
      %v1488 = vpack.c.b16 %v1479, %v1478
      %v1489 = vpack.c.b16 %v1481, %v1480
      %1498 = vmatprep.subr.bf16.mxu0 0
      %1499 = vmatpush1.bf16.msra.mxu0 %v1482
      %1500 = vmatprep.subr.bf16.mxu0 0
      %1501 = vmatpush1.bf16.msra.mxu0 %v1483
      %1502 = vmatprep.subr.bf16.mxu0 0
      %1503 = vmatpush1.bf16.msra.mxu0 %v1484
      %1504 = vmatprep.subr.bf16.mxu0 0
      %1505 = vmatpush1.bf16.msra.mxu0 %v1485
      %1506 = vmatprep.subr.bf16.mxu0 0
      %1507 = vmatpush1.bf16.msra.mxu0 %v1486
      %1508 = vmatprep.subr.bf16.mxu0 0
      %1509 = vmatpush1.bf16.msra.mxu0 %v1487
      %1510 = vmatprep.subr.bf16.mxu0 0
      %1511 = vmatpush1.bf16.msra.mxu0 %v1488
      %1512 = vmatprep.subr.bf16.mxu0 0
      %1513 = vmatpush1.bf16.msra.mxu0 %v1489
      %1514 = vmatprep.subr.bf16.mxu0 0
      %1515 = vmatpush1.bf16.msra.mxu0 0
      %1516 = vmatprep.subr.bf16.mxu0 0
      %1517 = vmatpush1.bf16.msra.mxu0 0
      %1518 = vmatprep.subr.bf16.mxu0 0
      %1519 = vmatpush1.bf16.msra.mxu0 0
      %1520 = vmatprep.subr.bf16.mxu0 0
      %1521 = vmatpush1.bf16.msra.mxu0 0
      %1522 = vmatprep.subr.bf16.mxu0 0
      %1523 = vmatpush1.bf16.msra.mxu0 0
      %1524 = vmatprep.subr.bf16.mxu0 0
      %1525 = vmatpush1.bf16.msra.mxu0 0
      %1526 = vmatprep.subr.bf16.mxu0 0
      %1527 = vmatpush1.bf16.msra.mxu0 0
      %1528 = vmatprep.subr.bf16.mxu0 0
      %1529 = vmatpush1.bf16.msra.mxu0 0
      %1530 = vmatprep.mubr.bf16.mxu0 0
      %1531 = vmatmul.mubr.bf16.gmra.mrb[0].mxu0 %v1429
      %v1532 = vpop.f32.mrb[0].mxu0
      %v1533 = vadd.f32 %v1449, %v1532
      %v1534 = vpop.f32.mrb[0].mxu0
      %v1535 = vpop.f32.mrb[0].mxu0
      %v1536 = vpop.f32.mrb[0].mxu0
      %1537 = vdwg.mxu0
      %v1538 = vadd.f32 %v1533, %v1355
      %v1539 = vsel %vm535, %v1538, 0.0
      %1540 = vadd.xlane.f32.xlu0 %v1539
      %v1541 = vpop.xlane.xlu0 %1540
      %v1542 = vmul.f32 %v1541, %v1335
      %v1543 = vsub.f32 %v1538, %v1542
      %v1544 = vmul.f32 %v1543, %v1543
      %v1545 = vsel %vm535, %v1544, 0.0
      %1546 = vadd.xlane.f32.xlu0 %v1545
      %v1547 = vpop.xlane.xlu0 %1546
      %v1548 = vmul.f32 %v1547, %v1335
      %v1549 = vadd.f32 %v1548, 1e-12
      %v1550 = vrsqrt.pop %v1549
      %v1551 = vmul.f32 %v1543, %v1550
      %v1552 = vlaneseq
      %v1553 = vshrl.u32 %v1552, 7
      %v1554 = vsub.s32 6, %v1553
      %v1555 = vrot.slane %v512, %v1554
      %v1556 = vmul.f32 %v1551, %v1555
      %v1557 = vlaneseq
      %v1558 = vshrl.u32 %v1557, 7
      %v1559 = vsub.s32 7, %v1558
      %v1560 = vrot.slane %v512, %v1559
      %v1561 = vadd.f32 %v1556, %v1560
      %1562 = vst.msk [vmem:[#allocation2] sm:$0xff] %vm535, %v1561
      %p1563 = scmp.eq.s32.totalorder %s26, 1
      // Predicated region
      $region65: #{bert_qp_forward.1} parent=59 // pred_check
        %p1564 = pneg %p1563
      $region66: #{bert_qp_forward.1} parent=59 // pred_check_branch
        %1566 = sbr.rel (%p1564) target = $region68
      $region67: #{bert_qp_forward.1} parent=59 // pred_region
        %v1567 = vld [vmem:[%s7] sm:$0xff]
        %v1568 = vld [vmem:[%s7 + $0x8] sm:$0xff]
        %v1569 = vld [vmem:[%s7 + $0x10] sm:$0xff]
        %v1570 = vld [vmem:[%s7 + $0x18] sm:$0xff]
        %v1572 = vrot.slane %v479, 2
        %v1575 = vsel %vm535, %v1561, 0
        %1577 = vmatprep.subr.mxu0 0.0
        %1578 = vmatpush1.msra.mxu0 %v1567
        %1579 = vmatprep.subr.mxu0 0.0
        %1580 = vmatpush1.msra.mxu0 %v1568
        %1581 = vmatprep.subr.mxu0 0.0
        %1582 = vmatpush1.msra.mxu0 %v1569
        %1583 = vmatprep.subr.mxu0 0.0
        %1584 = vmatpush1.msra.mxu0 %v1570
        %1585 = vmatprep.subr.mxu0 0.0
        %1586 = vmatpush1.msra.mxu0 0.0
        %1587 = vmatprep.subr.mxu0 0.0
        %1588 = vmatpush1.msra.mxu0 0.0
        %1589 = vmatprep.subr.mxu0 0.0
        %1590 = vmatpush1.msra.mxu0 0.0
        %1591 = vmatprep.subr.mxu0 0.0
        %1592 = vmatpush1.msra.mxu0 0.0
        %1593 = vmatprep.subr.mxu0 0.0
        %1594 = vmatpush1.msra.mxu0 0.0
        %1595 = vmatprep.subr.mxu0 0.0
        %1596 = vmatpush1.msra.mxu0 0.0
        %1597 = vmatprep.subr.mxu0 0.0
        %1598 = vmatpush1.msra.mxu0 0.0
        %1599 = vmatprep.subr.mxu0 0.0
        %1600 = vmatpush1.msra.mxu0 0.0
        %1601 = vmatprep.subr.mxu0 0.0
        %1602 = vmatpush1.msra.mxu0 0.0
        %1603 = vmatprep.subr.mxu0 0.0
        %1604 = vmatpush1.msra.mxu0 0.0
        %1605 = vmatprep.subr.mxu0 0.0
        %1606 = vmatpush1.msra.mxu0 0.0
        %1607 = vmatprep.subr.mxu0 0.0
        %1608 = vmatpush1.msra.mxu0 0.0
        %1609 = vmatprep.subr.mxu0 0.0
        %1610 = vmatpush1.msra.mxu0 0.0
        %1611 = vmatprep.subr.mxu0 0.0
        %1612 = vmatpush1.msra.mxu0 0.0
        %1613 = vmatprep.subr.mxu0 0.0
        %1614 = vmatpush1.msra.mxu0 0.0
        %1615 = vmatprep.subr.mxu0 0.0
        %1616 = vmatpush1.msra.mxu0 0.0
        %1617 = vmatprep.subr.mxu0 0.0
        %1618 = vmatpush1.msra.mxu0 0.0
        %1619 = vmatprep.subr.mxu0 0.0
        %1620 = vmatpush1.msra.mxu0 0.0
        %1621 = vmatprep.subr.mxu0 0.0
        %1622 = vmatpush1.msra.mxu0 0.0
        %1623 = vmatprep.subr.mxu0 0.0
        %1624 = vmatpush1.msra.mxu0 0.0
        %1625 = vmatprep.subr.mxu0 0.0
        %1626 = vmatpush1.msra.mxu0 0.0
        %1627 = vmatprep.subr.mxu0 0.0
        %1628 = vmatpush1.msra.mxu0 0.0
        %1629 = vmatprep.subr.mxu0 0.0
        %1630 = vmatpush1.msra.mxu0 0.0
        %1631 = vmatprep.subr.mxu0 0.0
        %1632 = vmatpush1.msra.mxu0 0.0
        %1633 = vmatprep.subr.mxu0 0.0
        %1634 = vmatpush1.msra.mxu0 0.0
        %1635 = vmatprep.subr.mxu0 0.0
        %1636 = vmatpush1.msra.mxu0 0.0
        %1637 = vmatprep.subr.mxu0 0.0
        %1638 = vmatpush1.msra.mxu0 0.0
        %1639 = vmatprep.subr.mxu0 0.0
        %1640 = vmatpush1.msra.mxu0 0.0
        %1641 = vmatprep.mubr.f32.mxu0 0.0
        %1642 = vmatmul.mubr.f32.gmra.mrb[0].mxu0 %v1575
        %v1643 = vpop.f32.mrb[0].mxu0
        %v1644 = vadd.f32 %v1572, %v1643
        %v1645 = vpop.f32.mrb[0].mxu0
        %1646 = vdwg.mxu0
        %v1647 = vtanh.pop %v1644
        %v1648 = vld [vmem:[%s8] sm:$0xff]
        %v1649 = vld [vmem:[%s8 + $0x8] sm:$0xff]
        %v1650 = vld [vmem:[%s8 + $0x10] sm:$0xff]
        %v1651 = vld [vmem:[%s8 + $0x18] sm:$0xff]
        %v1652 = vrot.slane %v479, 3
        %v1655 = vsel %vm535, %v1647, 0
        %1657 = vmatprep.subr.mxu0 0.0
        %1658 = vmatpush1.msra.mxu0 %v1648
        %1659 = vmatprep.subr.mxu0 0.0
        %1660 = vmatpush1.msra.mxu0 %v1649
        %1661 = vmatprep.subr.mxu0 0.0
        %1662 = vmatpush1.msra.mxu0 %v1650
        %1663 = vmatprep.subr.mxu0 0.0
        %1664 = vmatpush1.msra.mxu0 %v1651
        %1665 = vmatprep.subr.mxu0 0.0
        %1666 = vmatpush1.msra.mxu0 0.0
        %1667 = vmatprep.subr.mxu0 0.0
        %1668 = vmatpush1.msra.mxu0 0.0
        %1669 = vmatprep.subr.mxu0 0.0
        %1670 = vmatpush1.msra.mxu0 0.0
        %1671 = vmatprep.subr.mxu0 0.0
        %1672 = vmatpush1.msra.mxu0 0.0
        %1673 = vmatprep.subr.mxu0 0.0
        %1674 = vmatpush1.msra.mxu0 0.0
        %1675 = vmatprep.subr.mxu0 0.0
        %1676 = vmatpush1.msra.mxu0 0.0
        %1677 = vmatprep.subr.mxu0 0.0
        %1678 = vmatpush1.msra.mxu0 0.0
        %1679 = vmatprep.subr.mxu0 0.0
        %1680 = vmatpush1.msra.mxu0 0.0
        %1681 = vmatprep.subr.mxu0 0.0
        %1682 = vmatpush1.msra.mxu0 0.0
        %1683 = vmatprep.subr.mxu0 0.0
        %1684 = vmatpush1.msra.mxu0 0.0
        %1685 = vmatprep.subr.mxu0 0.0
        %1686 = vmatpush1.msra.mxu0 0.0
        %1687 = vmatprep.subr.mxu0 0.0
        %1688 = vmatpush1.msra.mxu0 0.0
        %1689 = vmatprep.subr.mxu0 0.0
        %1690 = vmatpush1.msra.mxu0 0.0
        %1691 = vmatprep.subr.mxu0 0.0
        %1692 = vmatpush1.msra.mxu0 0.0
        %1693 = vmatprep.subr.mxu0 0.0
        %1694 = vmatpush1.msra.mxu0 0.0
        %1695 = vmatprep.subr.mxu0 0.0
        %1696 = vmatpush1.msra.mxu0 0.0
        %1697 = vmatprep.subr.mxu0 0.0
        %1698 = vmatpush1.msra.mxu0 0.0
        %1699 = vmatprep.subr.mxu0 0.0
        %1700 = vmatpush1.msra.mxu0 0.0
        %1701 = vmatprep.subr.mxu0 0.0
        %1702 = vmatpush1.msra.mxu0 0.0
        %1703 = vmatprep.subr.mxu0 0.0
        %1704 = vmatpush1.msra.mxu0 0.0
        %1705 = vmatprep.subr.mxu0 0.0
        %1706 = vmatpush1.msra.mxu0 0.0
        %1707 = vmatprep.subr.mxu0 0.0
        %1708 = vmatpush1.msra.mxu0 0.0
        %1709 = vmatprep.subr.mxu0 0.0
        %1710 = vmatpush1.msra.mxu0 0.0
        %1711 = vmatprep.subr.mxu0 0.0
        %1712 = vmatpush1.msra.mxu0 0.0
        %1713 = vmatprep.subr.mxu0 0.0
        %1714 = vmatpush1.msra.mxu0 0.0
        %1715 = vmatprep.subr.mxu0 0.0
        %1716 = vmatpush1.msra.mxu0 0.0
        %1717 = vmatprep.subr.mxu0 0.0
        %1718 = vmatpush1.msra.mxu0 0.0
        %1719 = vmatprep.subr.mxu0 0.0
        %1720 = vmatpush1.msra.mxu0 0.0
        %1721 = vmatprep.mubr.f32.mxu0 0.0
        %1722 = vmatmul.mubr.f32.gmra.mrb[0].mxu0 %v1655
        %v1723 = vpop.f32.mrb[0].mxu0
        %v1724 = vadd.f32 %v1652, %v1723
        %v1725 = vpop.f32.mrb[0].mxu0
        %1726 = vdwg.mxu0
        %v1727 = vlaneseq
        %v1728 = vshrl.u32 %v1727, 7
        %v1729 = vsub.s32 0, %v1728
        %v1730 = vrot.slane %v1724, %v1729
        %1731 = vst [vmem:[%s477] sm:$0xff] %v1730
      $region68: #{bert_qp_forward.1} parent=59 // pred_fallthru
        _
      %p1732 = scmp.lt.s32.totalorder %s25, 1
      %s1733 = scalar_select %p1732, %s25, 1
      %s1734 = smul.addr %s1733, 8
      %s1735 = scalar_lea.vmem %s10, %s1734
      // Predicated region
      $region69: #{bert_qp_forward.1} parent=59 // pred_check
        %p1736 = pneg %p296
      $region70: #{bert_qp_forward.1} parent=59 // pred_check_branch
        %1738 = sbr.rel (%p1736) target = $region72
      $region71: #{bert_qp_forward.1} parent=59 // pred_region
        _
      $region72: #{bert_qp_forward.1} parent=59 // pred_fallthru
        _
    $region60: #{bert_qp_forward.1} parent=5 // pred_fallthru
      _
    %p1739 = scmp.le.s32.totalorder 2, %s16
    // Predicated region
    $region73: #{bert_qp_forward.1} parent=5 // pred_check
      %p1740 = pneg %p1739
    $region74: #{bert_qp_forward.1} parent=5 // pred_check_branch
      %1742 = sbr.rel (%p1740) target = $region76
    $region75: #{bert_qp_forward.1} parent=5 // pred_region
      %s1743 = ssub.s32 %s16, 2
      // Predicated region
      $region77: #{bert_qp_forward.1} parent=75 // pred_check
        %p1744 = pneg %p302
      $region78: #{bert_qp_forward.1} parent=75 // pred_check_branch
        %1746 = sbr.rel (%p1744) target = $region80
      $region79: #{bert_qp_forward.1} parent=75 // pred_region
        %p1747 = scmp.lt.s32.totalorder %s27, 1
        %s1748 = scalar_select %p1747, %s27, 1
        %s1749 = smul.addr %s1748, 8
        %s1750 = scalar_lea.vmem %s10, %s1749
      $region80: #{bert_qp_forward.1} parent=75 // pred_fallthru
        _
    $region76: #{bert_qp_forward.1} parent=5 // pred_fallthru
      _
  $region6: #{bert_qp_forward.1} parent=0 // loop_footer
    %s20 = sadd.s32 1, %s16
  $region7: #{bert_qp_forward.1} parent=0 // loop_footer_branch
    %15 = sbr.rel target = $region3
  $region8: #{bert_qp_forward.1} parent=0 // loop_exit
    _

</llo_original>
